<compile_context>
chip_gen: v7x
topology: tpu7x:2x2x1
jax: 0.10.0
libtpu: 0.0.40
codegen_flags: <defaults>
</compile_context>

<pallas_src>
import math
import functools

import jax
import jax.numpy as jnp
from jax import lax
from jax.experimental import pallas as pl
from jax.experimental.pallas import tpu as pltpu


_VMEM_LIMIT = 32 * 1024 * 1024  # safe on v5e/v6e (128 MiB) and v7x (64 MiB physical)


# ----------------------------- helpers ------------------------------------

def _fit_tile(dim, pref, align=1):
    """Largest multiple of `align` that is <= pref and divides `dim`.

    Falls back to the full dimension (always a legal block shape) only if no
    aligned divisor exists — never silently inflates a tile past `pref`+align.
    """
    t = min(pref, dim)
    t -= t % align
    while t >= align:
        if dim % t == 0:
            return t
        t -= align
    return dim


# ----------------------- tiled projection matmul ---------------------------

def _matmul_kernel(x_ref, w_ref, o_ref, acc_ref):
    # x: (tm, tk), w: (tk, tn) -> acc/o: (tm, tn). fp32 accumulation on the MXU.
    @pl.when(pl.program_id(2) == 0)
    def _init():
        acc_ref[...] = jnp.zeros_like(acc_ref)

    acc_ref[...] += jnp.dot(
        x_ref[...], w_ref[...], preferred_element_type=jnp.float32
    )

    @pl.when(pl.program_id(2) == pl.num_programs(2) - 1)
    def _finalize():
        o_ref[...] = acc_ref[...].astype(o_ref.dtype)


def pallas_matmul(x, w, *, tm=256, tn=256, tk=512):
    """x: (M, K), w: (K, N)  ->  (M, N) in x.dtype, fp32 accumulation."""
    M, K = x.shape
    K2, N = w.shape
    assert K == K2
    tm = _fit_tile(M, tm, 8)
    tn = _fit_tile(N, tn, 128)
    tk = _fit_tile(K, tk, 128)
    grid = (M // tm, N // tn, K // tk)
    return pl.pallas_call(
        _matmul_kernel,
        out_shape=jax.ShapeDtypeStruct((M, N), x.dtype),
        grid=grid,
        in_specs=[
            pl.BlockSpec((tm, tk), lambda i, j, k: (i, k)),
            pl.BlockSpec((tk, tn), lambda i, j, k: (k, j)),
        ],
        out_specs=pl.BlockSpec((tm, tn), lambda i, j, k: (i, j)),
        scratch_shapes=[pltpu.VMEM((tm, tn), jnp.float32)],
        compiler_params=pltpu.CompilerParams(
            dimension_semantics=("parallel", "parallel", "arbitrary"),
            vmem_limit_bytes=_VMEM_LIMIT,
        ),
    )(x, w)


# ------------- fused RoPE + GQA flash attention kernel ----------------------

def _fused_attn_kernel(q_ref, k_ref, v_ref, cos_q_ref, sin_q_ref,
                       cos_k_ref, sin_k_ref, o_ref,
                       q_sc, m_sc, l_sc, acc_sc,
                       *, scale, causal, groups, head_dim, tq, tk, exact_recip):
    qi = pl.program_id(2)
    ki = pl.program_id(3)
    G, D = groups, head_dim
    half = D // 2

    @pl.when(ki == 0)
    def _init():
        # RoPE + 1/sqrt(D) scale applied ONCE per q block (persists across ki),
        # rotate_half(x)*sin == roll(x, D/2)*sin_signed (sign folded outside).
        cos = cos_q_ref[0].astype(jnp.float32)            # (tq, D)
        sin = sin_q_ref[0].astype(jnp.float32)            # (tq, D), sign-folded
        for g in range(G):
            qg = q_ref[0, :, g * D:(g + 1) * D].astype(jnp.float32)
            qr = (qg * cos + pltpu.roll(qg, shift=half, axis=1) * sin) * scale
            q_sc[g] = qr.astype(q_sc.dtype)
        m_sc[...] = jnp.full_like(m_sc, -jnp.inf)
        l_sc[...] = jnp.zeros_like(l_sc)
        acc_sc[...] = jnp.zeros_like(acc_sc)

    def _compute():
        # RoPE the K tile in-kernel (amortized over the whole GQA group).
        cos = cos_k_ref[0].astype(jnp.float32)            # (tk, D)
        sin = sin_k_ref[0].astype(jnp.float32)
        kf = k_ref[0].astype(jnp.float32)                 # (tk, D)
        kf = kf * cos + pltpu.roll(kf, shift=half, axis=1) * sin
        k = kf.astype(k_ref.dtype)
        v = v_ref[0]                                      # (tk, D)

        if causal:
            row = qi * tq + lax.broadcasted_iota(jnp.int32, (tq, tk), 0)
            col = ki * tk + lax.broadcasted_iota(jnp.int32, (tq, tk), 1)
            keep = row >= col                             # -1e30 keeps exp NaN-free

        for g in range(G):                                # unrolled over the GQA group
            q = q_sc[g]                                   # (tq, D), roped + pre-scaled
            # QK^T without materializing a transposed K copy (contract last dims).
            s = lax.dot_general(
                q, k, dimension_numbers=(((1,), (1,)), ((), ())),
                preferred_element_type=jnp.float32,
            )                                             # (tq, tk) fp32
            if causal:
                s = jnp.where(keep, s, -1e30)
            m_prev = m_sc[g]                              # (tq, 1)
            m_new = jnp.maximum(m_prev, jnp.max(s, axis=-1, keepdims=True))
            alpha = jnp.exp(m_prev - m_new)
            p = jnp.exp(s - m_new)                        # fp32 softmax stats
            l_sc[g] = alpha * l_sc[g] + jnp.sum(p, axis=-1, keepdims=True)
            acc_sc[g] = alpha * acc_sc[g] + jnp.dot(
                p.astype(v.dtype), v, preferred_element_type=jnp.float32
            )
            m_sc[g] = m_new

    if causal:
        # Blocks entirely above the diagonal: compute skipped AND their K/V DMA
        # elided (index_map clamps them to the already-resident diagonal block).
        pl.when(ki * tk <= qi * tq + (tq - 1))(_compute)
    else:
        _compute()

    @pl.when(ki == pl.num_programs(3) - 1)
    def _finalize():
        for g in range(G):
            if exact_recip:
                inv_l = 1.0 / l_sc[g]                     # exact divide (fp32 path)
            else:
                inv_l = pl.reciprocal(l_sc[g], approx=True)   # EUP slot, ~free
            o_ref[0, :, g * D:(g + 1) * D] = (acc_sc[g] * inv_l).astype(o_ref.dtype)


def pallas_fused_attention(qkv, cos, sin_signed, *, num_heads, num_kv_heads,
                           head_dim, causal=True, tq=256, tk=256):
    """qkv: (B, S, (H+2*Hkv)*D) fused projection output (q|k|v along last dim).

    cos/sin_signed: (B, S, D). Returns attention output in (B, S, H*D) layout.
    Per-head q/k/v columns are sliced directly via BlockSpecs (no transposes).
    """
    B, S, W = qkv.shape
    H, Hkv, D = num_heads, num_kv_heads, head_dim
    G = H // Hkv
    assert W == (H + 2 * Hkv) * D
    assert D % 128 == 0, "head_dim must be lane-aligned (multiple of 128)"

    tq = _fit_tile(S, tq, 8)
    tk = _fit_tile(S, tk, 8)
    nq, nk = S // tq, S // tk
    scale = 1.0 / math.sqrt(D)
    dtype = qkv.dtype
    exact_recip = (dtype == jnp.float32)

    def _clamp(qi, ki):
        if not causal:
            return ki
        last = (qi * tq + tq - 1) // tk                   # last relevant kv block
        return jnp.minimum(ki, last)

    q_map = lambda b, h, qi, ki: (b, qi, h)               # block width G*D -> group cols
    k_map = lambda b, h, qi, ki: (b, _clamp(qi, ki), H + h)        # width D
    v_map = lambda b, h, qi, ki: (b, _clamp(qi, ki), H + Hkv + h)  # width D
    cq_map = lambda b, h, qi, ki: (b, qi, 0)
    ck_map = lambda b, h, qi, ki: (b, _clamp(qi, ki), 0)
    o_map = lambda b, h, qi, ki: (b, qi, h)

    kernel = functools.partial(
        _fused_attn_kernel, scale=scale, causal=causal, groups=G, head_dim=D,
        tq=tq, tk=tk, exact_recip=exact_recip)

    return pl.pallas_call(
        kernel,
        out_shape=jax.ShapeDtypeStruct((B, S, H * D), dtype),
        grid=(B, Hkv, nq, nk),
        in_specs=[
            pl.BlockSpec((1, tq, G * D), q_map),          # q group tile
            pl.BlockSpec((1, tk, D), k_map),              # k head tile
            pl.BlockSpec((1, tk, D), v_map),              # v head tile
            pl.BlockSpec((1, tq, D), cq_map),             # cos for q
            pl.BlockSpec((1, tq, D), cq_map),             # sin_signed for q
            pl.BlockSpec((1, tk, D), ck_map),             # cos for k
            pl.BlockSpec((1, tk, D), ck_map),             # sin_signed for k
        ],
        out_specs=pl.BlockSpec((1, tq, G * D), o_map),
        scratch_shapes=[
            pltpu.VMEM((G, tq, D), dtype),                # roped + pre-scaled q
            pltpu.VMEM((G, tq, 1), jnp.float32),          # m (running max)
            pltpu.VMEM((G, tq, 1), jnp.float32),          # l (running denom)
            pltpu.VMEM((G, tq, D), jnp.float32),          # acc (running numerator)
        ],
        compiler_params=pltpu.CompilerParams(
            dimension_semantics=("parallel", "parallel", "parallel", "arbitrary"),
            vmem_limit_bytes=_VMEM_LIMIT,
        ),
    )(qkv, qkv, qkv, cos, sin_signed, cos, sin_signed)


# ---------------------------- module wrapper --------------------------------

def prepare_attention_params(linear_params):
    """Transpose nn.Linear (out,in) weights to (in,out) and fuse [Wq|Wk|Wv] ONCE."""
    wq = jnp.asarray(linear_params["q_proj"]).T
    wk = jnp.asarray(linear_params["k_proj"]).T
    wv = jnp.asarray(linear_params["v_proj"]).T
    return {
        "qkv_proj": jnp.concatenate([wq, wk, wv], axis=1),   # (hidden, (H+2Hkv)*D)
        "o_proj": jnp.asarray(linear_params["o_proj"]).T,    # (H*D, hidden)
    }


def tpi_llama_attention_forward(
    hidden_states,       # (B, S, hidden)
    cos, sin,            # (B, S, head_dim)  -- position_embeddings
    params,              # {"qkv_proj": (hidden,(H+2Hkv)*D), "o_proj": (H*D, hidden)}
    num_heads, num_kv_heads, head_dim,
    causal=True,
):
    B, S, hidden = hidden_states.shape
    x2d = hidden_states.reshape(B * S, hidden)

    # Single fused Q/K/V projection (activations read from HBM once).
    qkv = pallas_matmul(x2d, params["qkv_proj"])
    qkv = qkv.reshape(B, S, (num_heads + 2 * num_kv_heads) * head_dim)

    # rotate_half(x) * sin == roll(x, D/2) * sin_signed  (sign pre-folded).
    half = head_dim // 2
    sin_signed = jnp.concatenate([-sin[..., :half], sin[..., half:]], axis=-1)

    # RoPE + GQA flash attention fused; heads sliced straight from the fused
    # projection output via BlockSpecs — no host-side reshapes/transposes.
    attn = pallas_fused_attention(
        qkv, cos, sin_signed, num_heads=num_heads, num_kv_heads=num_kv_heads,
        head_dim=head_dim, causal=causal)                 # (B, S, H*D)

    out = pallas_matmul(attn.reshape(B * S, num_heads * head_dim), params["o_proj"])
    return out.reshape(B, S, hidden)


# ----------------------------- reference (pure JAX) --------------------------

def _rotate_half(x):
    d = x.shape[-1]
    return jnp.concatenate([-x[..., d // 2:], x[..., :d // 2]], axis=-1)


def reference_forward(hidden_states, attention_mask, cos, sin, linear_params,
                      num_heads, num_kv_heads, head_dim):
    """Mirrors the PyTorch eager path (HF LlamaAttention, empty KV cache)."""
    B, S, hidden = hidden_states.shape
    groups = num_heads // num_kv_heads
    q = hidden_states @ linear_params["q_proj"].T
    k = hidden_states @ linear_params["k_proj"].T
    v = hidden_states @ linear_params["v_proj"].T
    q = q.reshape(B, S, num_heads, head_dim).transpose(0, 2, 1, 3)
    k = k.reshape(B, S, num_kv_heads, head_dim).transpose(0, 2, 1, 3)
    v = v.reshape(B, S, num_kv_heads, head_dim).transpose(0, 2, 1, 3)
    c = cos[:, None]
    s = sin[:, None]
    q = q * c + _rotate_half(q) * s
    k = k * c + _rotate_half(k) * s
    k = jnp.repeat(k, groups, axis=1)
    v = jnp.repeat(v, groups, axis=1)
    w = (q @ jnp.swapaxes(k, 2, 3)) / math.sqrt(head_dim)
    w = w + attention_mask
    w = jax.nn.softmax(w.astype(jnp.float32), axis=-1).astype(q.dtype)
    o = w @ v
    o = o.transpose(0, 2, 1, 3).reshape(B, S, num_heads * head_dim)
    return o @ linear_params["o_proj"].T


# ----------------------------------- main ------------------------------------

if __name__ == "__main__":
    # Small LLaMA-like config (lane-dense head_dim=128, GQA group of 2).
    B, S = 2, 256
    num_heads, num_kv_heads, head_dim = 4, 2, 128
    hidden = num_heads * head_dim        # 512
    rope_base = 10000.0

    key = jax.random.PRNGKey(0)
    k_x, k_q, k_k, k_v, k_o = jax.random.split(key, 5)

    hidden_states_f32 = jax.random.normal(k_x, (B, S, hidden), dtype=jnp.float32)
    # nn.Linear weight layout: (out_features, in_features); attention_bias=False.
    linear_params_f32 = {
        "q_proj": 0.05 * jax.random.normal(k_q, (num_heads * head_dim, hidden), jnp.float32),
        "k_proj": 0.05 * jax.random.normal(k_k, (num_kv_heads * head_dim, hidden), jnp.float32),
        "v_proj": 0.05 * jax.random.normal(k_v, (num_kv_heads * head_dim, hidden), jnp.float32),
        "o_proj": 0.05 * jax.random.normal(k_o, (hidden, num_heads * head_dim), jnp.float32),
    }

    # Rotary position embeddings (LlamaRotaryEmbedding semantics).
    inv_freq = 1.0 / (rope_base ** (jnp.arange(0, head_dim, 2, dtype=jnp.float32) / head_dim))
    positions = jnp.arange(S, dtype=jnp.float32)
    freqs = positions[:, None] * inv_freq[None, :]                  # (S, D/2)
    emb = jnp.concatenate([freqs, freqs], axis=-1)                  # (S, D)
    cos_f32 = jnp.broadcast_to(jnp.cos(emb)[None], (B, S, head_dim))
    sin_f32 = jnp.broadcast_to(jnp.sin(emb)[None], (B, S, head_dim))

    # Causal additive mask for the reference (safe -1e30 instead of finfo.min).
    causal_ok = jnp.tril(jnp.ones((S, S), dtype=bool))
    ref_mask = jnp.where(causal_ok, 0.0, -1e30).astype(jnp.float32)[None, None]
    ref_mask = jnp.broadcast_to(ref_mask, (B, 1, S, S))

    def run_case(dtype, rtol, atol):
        hs = hidden_states_f32.astype(dtype)
        lp = {n: w.astype(dtype) for n, w in linear_params_f32.items()}
        cos = cos_f32.astype(dtype)
        sin = sin_f32.astype(dtype)
        params = prepare_attention_params(lp)          # fused (in,out) layout, once
        out = tpi_llama_attention_forward(
            hs, cos, sin, params, num_heads, num_kv_heads, head_dim, causal=True)
        out = jax.block_until_ready(out)
        assert out.shape == (B, S, hidden)
        ref = reference_forward(hs, ref_mask.astype(dtype), cos, sin, lp,
                                num_heads, num_kv_heads, head_dim)
        ok = jnp.allclose(out.astype(jnp.float32), ref.astype(jnp.float32),
                          rtol=rtol, atol=atol)
        assert ok, f"mismatch vs reference for dtype={dtype}"

    # Exact path (fp32 operands, fp32 accumulation, exact 1/l divide).
    run_case(jnp.float32, rtol=1e-2, atol=1e-2)
    # Fast path (bf16 MXU operands, fp32 accumulation, fp32 softmax stats).
    run_case(jnp.bfloat16, rtol=1e-1, atol=1e-1)

    print("KERNEL_OK")
</pallas_src>

<mosaic_0001>
module attributes {stable_mosaic.version = 11 : i64} {
  func.func @_matmul_kernel(%arg0: i32, %arg1: i32, %arg2: i32, %arg3: memref<256x512xf32, #tpu.memory_space<vmem>>, %arg4: memref<512x256xf32, #tpu.memory_space<vmem>>, %arg5: memref<256x256xf32, #tpu.memory_space<vmem>>, %arg6: memref<256x256xf32, #tpu.memory_space<vmem>>) attributes {dimension_semantics = [#tpu.dimension_semantics<parallel>, #tpu.dimension_semantics<parallel>, #tpu.dimension_semantics<arbitrary>], iteration_bounds = array<i64: 2, 4, 1>, scalar_prefetch = 0 : i64, scratch_operands = 1 : i64, tpu.core_type = #tpu.core_type<tc>, window_params = [{transform_indices = @transform_0, window_bounds = array<i64: 256, 512>}, {transform_indices = @transform_1, window_bounds = array<i64: 512, 256>}, {transform_indices = @transform_2, window_bounds = array<i64: 256, 256>}]} {
    %c0_i32 = arith.constant 0 : i32
    %0 = arith.cmpi eq, %arg2, %c0_i32 : i32
    %1 = arith.extui %0 : i1 to i32
    %c0_i32_0 = arith.constant 0 : i32
    %2 = arith.cmpi ne, %1, %c0_i32_0 : i32
    scf.if %2 {
      %cst_10 = arith.constant 0.000000e+00 : f32
      %12 = vector.broadcast %cst_10 : f32 to vector<256x256xf32>
      %c0_11 = arith.constant 0 : index
      %c0_12 = arith.constant 0 : index
      %13 = vector.load %arg6[%c0_11, %c0_12] : memref<256x256xf32, #tpu.memory_space<vmem>>, vector<256x256xf32>
      tpu.vector_store %arg6[%c0_11, %c0_12], %12 {strides = array<i32>} : memref<256x256xf32, #tpu.memory_space<vmem>>, vector<256x256xf32>,
    } else {
    }
    %c0 = arith.constant 0 : index
    %c0_1 = arith.constant 0 : index
    %3 = vector.load %arg6[%c0, %c0_1] : memref<256x256xf32, #tpu.memory_space<vmem>>, vector<256x256xf32>
    %c0_2 = arith.constant 0 : index
    %c0_3 = arith.constant 0 : index
    %4 = vector.load %arg3[%c0_2, %c0_3] : memref<256x512xf32, #tpu.memory_space<vmem>>, vector<256x512xf32>
    %c0_4 = arith.constant 0 : index
    %c0_5 = arith.constant 0 : index
    %5 = vector.load %arg4[%c0_4, %c0_5] : memref<512x256xf32, #tpu.memory_space<vmem>>, vector<512x256xf32>
    %cst = arith.constant dense<0.000000e+00> : vector<256x256xf32>
    %6 = tpu.matmul %4, %5, %cst {dimension_numbers = #tpu.dot_dimension_numbers<[1], [0], [0], [1], [0, 0, 1, 1], [], []>} : vector<256x512xf32>, vector<512x256xf32>, vector<256x256xf32> -> vector<256x256xf32>
    %7 = arith.addf %3, %6 : vector<256x256xf32>
    %c0_6 = arith.constant 0 : index
    %c0_7 = arith.constant 0 : index
    %8 = vector.load %arg6[%c0_6, %c0_7] : memref<256x256xf32, #tpu.memory_space<vmem>>, vector<256x256xf32>
    tpu.vector_store %arg6[%c0_6, %c0_7], %7 {strides = array<i32>} : memref<256x256xf32, #tpu.memory_space<vmem>>, vector<256x256xf32>,
    %c0_i32_8 = arith.constant 0 : i32
    %9 = arith.cmpi eq, %arg2, %c0_i32_8 : i32
    %10 = arith.extui %9 : i1 to i32
    %c0_i32_9 = arith.constant 0 : i32
    %11 = arith.cmpi ne, %10, %c0_i32_9 : i32
    scf.if %11 {
      %c0_10 = arith.constant 0 : index
      %c0_11 = arith.constant 0 : index
      %12 = vector.load %arg6[%c0_10, %c0_11] : memref<256x256xf32, #tpu.memory_space<vmem>>, vector<256x256xf32>
      %c0_12 = arith.constant 0 : index
      %c0_13 = arith.constant 0 : index
      %13 = vector.load %arg5[%c0_12, %c0_13] : memref<256x256xf32, #tpu.memory_space<vmem>>, vector<256x256xf32>
      tpu.vector_store %arg5[%c0_12, %c0_13], %12 {strides = array<i32>} : memref<256x256xf32, #tpu.memory_space<vmem>>, vector<256x256xf32>,
    } else {
    }
    return
  }
  func.func @transform_0(%arg0: i32, %arg1: i32, %arg2: i32) -> (i32, i32) {
    %c0_i32 = arith.constant 0 : i32
    return %arg0, %arg2 : i32, i32
  }
  func.func @transform_1(%arg0: i32, %arg1: i32, %arg2: i32) -> (i32, i32) {
    %c0_i32 = arith.constant 0 : i32
    return %arg2, %arg1 : i32, i32
  }
  func.func @transform_2(%arg0: i32, %arg1: i32, %arg2: i32) -> (i32, i32) {
    %c0_i32 = arith.constant 0 : i32
    return %arg0, %arg1 : i32, i32
  }
}

</mosaic_0001>

<llo_original>
// kernel: tpu_custom_call.1
$region0: #{tpu_custom_call.1}
  #allocation0 [shape = 'u32[]', space=smem, size = 0x4, offset = 0x4, fixed_abs, tag = 'smem constant byte address 0x4 - core index']
  #allocation1 [shape = 'u32[144,128]{1,0:T(1,128)}', space=vmem, size = 0x12000, scoped, tag = 'internal scratch']
  #allocation2 [shape = 'f32[256,256]{1,0:T(8,128)}', space=vmem, size = 0x40000, scoped, tag = 'scratch operand']
  %s0 = inlined_call_operand.hbm [shape: f32[512,512], index: 0, kind: input, shape index: {}]
  %s1 = inlined_call_operand.hbm [shape: f32[512,1024], index: 1, kind: input, shape index: {}]
  %s2 = inlined_call_operand.hbm [shape: f32[512,1024], index: 2, kind: output, shape index: {}]
  %s3 = sld [smem:[#allocation0]]
  $region57: #{tpu_custom_call.1} parent=0
    _
  %s5 = ssub.s32 1, %s3
  %s6 = scalar_select 0, %s5, %s3
  $region1: #{tpu_custom_call.1} parent=0
    #allocation3 [shape = 'u8[1048576]{0}', space=vmem, size = 0x100000, scoped, tag = 'input window, operand 0']
    #allocation4 [shape = 's32[2]{0}', space=sflag, size = 0x8, scoped, tag = 'scoped memory for tpu_custom_call.1']
    #allocation5 [shape = 's32[2]{0}', space=sflag, size = 0x8, scoped, tag = 'scoped memory for tpu_custom_call.1']
    #allocation6 [shape = 'u8[1048576]{0}', space=vmem, size = 0x100000, scoped, tag = 'input window, operand 1']
    #allocation7 [shape = 's32[2]{0}', space=sflag, size = 0x8, scoped, tag = 'scoped memory for tpu_custom_call.1']
    #allocation8 [shape = 'u8[524288]{0}', space=vmem, size = 0x80000, scoped, tag = 'output window, operand 0']
    %7 = vsyncpa [#allocation4], 0
    %s8 = scalar_lea.sflag [#allocation4], 1
    %9 = vsyncpa %s8, 0
    %10 = vsyncpa [#allocation7], 0
    %s11 = scalar_lea.sflag [#allocation7], 1
    %12 = vsyncpa %s11, 0
    %13 = vsyncpa [#allocation5], 0
    %s14 = scalar_lea.sflag [#allocation5], 1
    %15 = vsyncpa %s14, 0
    loop: start=0, step=1, limit=10
    $region2: #{tpu_custom_call.1} parent=1 // loop_pre_header
      _
    $region3: #{tpu_custom_call.1} parent=1 // loop_header
      %s17 = sphi 0, %s21
      %p18 = scmp.ge.s32.totalorder %s17, 10
      %s24 = sphi 0, %s43
      %s25 = sphi 0, %s39
      %s26 = sphi 0, %s35
      %s27 = sphi 0, %s24
      %s28 = sphi 0, %s25
      %s29 = sphi 0, %s26
      %s30 = sphi 0, %s27
      %s31 = sphi 0, %s28
      %s32 = sphi 0, %s29
      %s48 = sphi 0, %s50
      %s51 = sphi 0, %s48
      %s52 = sphi 0, %s51
      %s68 = sphi 0, %s52
      %s76 = sphi 0, %s78
      %s79 = sphi 0, %s76
      %s80 = sphi 0, %s79
      %s96 = sphi 0, %s80
      %s104 = sphi 0, %s106
      %s107 = sphi 0, %s104
      %s108 = sphi 0, %s107
      %s124 = sphi 0, %s108
    $region4: #{tpu_custom_call.1} parent=1 // loop_header_branch
      %20 = sbr.rel (%p18) target = $region8
    $region5: #{tpu_custom_call.1} parent=1 // loop_body
      %s22 = ssub.s32 %s17, 1
      %s23 = ssub.s32 %s17, 2
      %s33 = sadd.s32 1, %s26
      %p34 = scmp.ge.s32.totalorder %s33, 1
      %s35 = scalar_select %p34, 0, %s33
      %s36 = sadd.s32 1, %s25
      %s37 = scalar_select %p34, %s36, %s25
      %p38 = scmp.ge.s32.totalorder %s37, 4
      %s39 = scalar_select %p38, 0, %s37
      %s40 = sadd.s32 1, %s24
      %s41 = scalar_select %p38, %s40, %s24
      %p42 = scmp.ge.s32.totalorder %s41, 2
      %s43 = scalar_select %p42, 0, %s41
      %s44 = ssub.s32 %s24, %s43
      %s45 = ssub.s32 %s26, %s35
      %s46 = sor.u32 %s44, %s45
      %p47 = scmp.eq.s32.totalorder %s46, 0
      %s49 = sadd.s32 %s48, 1
      %s50 = scalar_select %p47, %s48, %s49
      %p53 = pneg %p47
      %p54 = scmp.eq.s32.totalorder %s17, 7
      %p55 = por %p53, %p54
      %p56 = scmp.ne.s32.totalorder %s48, %s51
      %p57 = scmp.eq.s32.totalorder %s17, 0
      %p58 = por %p56, %p57
      %p59 = scmp.ne.s32.totalorder %s48, %s51
      %p60 = scmp.eq.s32.totalorder %s22, 7
      %p61 = por %p59, %p60
      %p62 = scmp.ne.s32.totalorder %s51, %s52
      %p63 = scmp.eq.s32.totalorder %s22, 0
      %p64 = por %p62, %p63
      %p65 = scmp.ne.s32.totalorder %s51, %s52
      %p66 = scmp.eq.s32.totalorder %s23, 7
      %p67 = por %p65, %p66
      %p69 = scmp.ne.s32.totalorder %s52, %s68
      %p70 = scmp.eq.s32.totalorder %s23, 0
      %p71 = por %p69, %p70
      %s72 = ssub.s32 %s26, %s35
      %s73 = ssub.s32 %s25, %s39
      %s74 = sor.u32 %s72, %s73
      %p75 = scmp.eq.s32.totalorder %s74, 0
      %s77 = sadd.s32 %s76, 1
      %s78 = scalar_select %p75, %s76, %s77
      %p81 = pneg %p75
      %p82 = scmp.eq.s32.totalorder %s17, 7
      %p83 = por %p81, %p82
      %p84 = scmp.ne.s32.totalorder %s76, %s79
      %p85 = scmp.eq.s32.totalorder %s17, 0
      %p86 = por %p84, %p85
      %p87 = scmp.ne.s32.totalorder %s76, %s79
      %p88 = scmp.eq.s32.totalorder %s22, 7
      %p89 = por %p87, %p88
      %p90 = scmp.ne.s32.totalorder %s79, %s80
      %p91 = scmp.eq.s32.totalorder %s22, 0
      %p92 = por %p90, %p91
      %p93 = scmp.ne.s32.totalorder %s79, %s80
      %p94 = scmp.eq.s32.totalorder %s23, 7
      %p95 = por %p93, %p94
      %p97 = scmp.ne.s32.totalorder %s80, %s96
      %p98 = scmp.eq.s32.totalorder %s23, 0
      %p99 = por %p97, %p98
      %s100 = ssub.s32 %s24, %s43
      %s101 = ssub.s32 %s25, %s39
      %s102 = sor.u32 %s100, %s101
      %p103 = scmp.eq.s32.totalorder %s102, 0
      %s105 = sadd.s32 %s104, 1
      %s106 = scalar_select %p103, %s104, %s105
      %p109 = pneg %p103
      %p110 = scmp.eq.s32.totalorder %s17, 7
      %p111 = por %p109, %p110
      %p112 = scmp.ne.s32.totalorder %s104, %s107
      %p113 = scmp.eq.s32.totalorder %s17, 0
      %p114 = por %p112, %p113
      %p115 = scmp.ne.s32.totalorder %s104, %s107
      %p116 = scmp.eq.s32.totalorder %s22, 7
      %p117 = por %p115, %p116
      %p118 = scmp.ne.s32.totalorder %s107, %s108
      %p119 = scmp.eq.s32.totalorder %s22, 0
      %p120 = por %p118, %p119
      %p121 = scmp.ne.s32.totalorder %s107, %s108
      %p122 = scmp.eq.s32.totalorder %s23, 7
      %p123 = por %p121, %p122
      %p125 = scmp.ne.s32.totalorder %s108, %s124
      %p126 = scmp.eq.s32.totalorder %s23, 0
      %p127 = por %p125, %p126
      %p128 = scmp.le.s32.totalorder 1, %s17
      %p129 = scmp.lt.s32.totalorder %s17, 9
      %p130 = pnand %p128, %p129
      %p131 = pneg %p130
      // Predicated region
      $region9: #{tpu_custom_call.1} parent=5 // pred_check
        _
      $region10: #{tpu_custom_call.1} parent=5 // pred_check_branch
        %133 = sbr.rel (%p130) target = $region12
      $region11: #{tpu_custom_call.1} parent=5 // pred_region
        %s134 = ssub.s32 %s17, 1
      $region12: #{tpu_custom_call.1} parent=5 // pred_fallthru
        _
      %p135 = scmp.lt.s32.totalorder %s17, 8
      // Predicated region
      $region13: #{tpu_custom_call.1} parent=5 // pred_check
        %p136 = pneg %p135
      $region14: #{tpu_custom_call.1} parent=5 // pred_check_branch
        %138 = sbr.rel (%p136) target = $region16
      $region15: #{tpu_custom_call.1} parent=5 // pred_region
        // Predicated region
        $region17: #{tpu_custom_call.1} parent=15 // pred_check
          %p139 = pneg %p58
        $region18: #{tpu_custom_call.1} parent=15 // pred_check_branch
          %141 = sbr.rel (%p139) target = $region20
        $region19: #{tpu_custom_call.1} parent=15 // pred_region
          %s142 = sand.u32 %s48, 1
          %s143 = scalar_lea.sflag [#allocation4], %s142
          %s144 = sand.u32 %s48, 1
          %s145 = smul.addr %s144, 1024
          %s146 = scalar_lea.vmem [#allocation3], %s145
          %s147 = smul.u32 32, %s24
          %s148 = smul.u32 4, %s26
          %s150 = ssub.s32 16384, 16384
          %151 = vsyncadd %s143, %s150
          %s152 = smul.addr %s147, 4
          %s153 = sadd.s32 %s148, %s152
          %s154 = smul.addr %s153, 128
          %s155 = scalar_lea.hbm %s0, %s154
          %s156 = sshll.u32 %s146, 4
          %s157 = int_to_ptr.vmem [resolvable:$true] %s156
          %162 = dma.hbm_to_vmem [thread:$0]  %s155, 16384, %s157, %s143, 512, 512, 32
        $region20: #{tpu_custom_call.1} parent=15 // pred_fallthru
          _
        // Predicated region
        $region21: #{tpu_custom_call.1} parent=15 // pred_check
          %p163 = pneg %p86
        $region22: #{tpu_custom_call.1} parent=15 // pred_check_branch
          %165 = sbr.rel (%p163) target = $region24
        $region23: #{tpu_custom_call.1} parent=15 // pred_region
          %s166 = sand.u32 %s76, 1
          %s167 = scalar_lea.sflag [#allocation7], %s166
          %s168 = sand.u32 %s76, 1
          %s169 = smul.addr %s168, 1024
          %s170 = scalar_lea.vmem [#allocation6], %s169
          %s171 = smul.u32 64, %s26
          %s172 = smul.u32 2, %s25
          %s174 = ssub.s32 16384, 16384
          %175 = vsyncadd %s167, %s174
          %s176 = smul.addr %s171, 8
          %s177 = sadd.s32 %s172, %s176
          %s178 = smul.addr %s177, 128
          %s179 = scalar_lea.hbm %s1, %s178
          %s180 = sshll.u32 %s170, 4
          %s181 = int_to_ptr.vmem [resolvable:$true] %s180
          %186 = dma.hbm_to_vmem [thread:$0]  %s179, 16384, %s181, %s167, 1024, 256, 16
        $region24: #{tpu_custom_call.1} parent=15 // pred_fallthru
          _
      $region16: #{tpu_custom_call.1} parent=5 // pred_fallthru
        _
      %p187 = scmp.le.s32.totalorder 1, %s17
      %p188 = scmp.lt.s32.totalorder %s17, 9
      %p189 = pnand %p187, %p188
      %p190 = pneg %p189
      // Predicated region
      $region25: #{tpu_custom_call.1} parent=5 // pred_check
        _
      $region26: #{tpu_custom_call.1} parent=5 // pred_check_branch
        %192 = sbr.rel (%p189) target = $region28
      $region27: #{tpu_custom_call.1} parent=5 // pred_region
        %s193 = ssub.s32 %s17, 1
        %s194 = sand.u32 %s51, 1
        %s195 = scalar_lea.sflag [#allocation4], %s194
        %s196 = sand.u32 %s51, 1
        %s197 = smul.addr %s196, 1024
        %s198 = scalar_lea.vmem [#allocation3], %s197
        // Predicated region
        $region29: #{tpu_custom_call.1} parent=27 // pred_check
          %p199 = pneg %p64
        $region30: #{tpu_custom_call.1} parent=27 // pred_check_branch
          %201 = sbr.rel (%p199) target = $region32
        $region31: #{tpu_custom_call.1} parent=27 // pred_region
          %202 = dma.done %s195, 16384
        $region32: #{tpu_custom_call.1} parent=27 // pred_fallthru
          _
        %s203 = sand.u32 %s79, 1
        %s204 = scalar_lea.sflag [#allocation7], %s203
        %s205 = sand.u32 %s79, 1
        %s206 = smul.addr %s205, 1024
        %s207 = scalar_lea.vmem [#allocation6], %s206
        // Predicated region
        $region33: #{tpu_custom_call.1} parent=27 // pred_check
          %p208 = pneg %p92
        $region34: #{tpu_custom_call.1} parent=27 // pred_check_branch
          %210 = sbr.rel (%p208) target = $region36
        $region35: #{tpu_custom_call.1} parent=27 // pred_region
          %211 = dma.done %s204, 16384
        $region36: #{tpu_custom_call.1} parent=27 // pred_fallthru
          _
        %s212 = sand.u32 %s51, 1
        %s213 = scalar_lea.sflag [#allocation4], %s212
        %s214 = sand.u32 %s51, 1
        %s215 = smul.addr %s214, 1024
        %s216 = scalar_lea.vmem [#allocation3], %s215
        %p217 = pneg %p64
        %p218 = pneg %p61
        %s219 = sand.u32 %s79, 1
        %s220 = scalar_lea.sflag [#allocation7], %s219
        %s221 = sand.u32 %s79, 1
        %s222 = smul.addr %s221, 1024
        %s223 = scalar_lea.vmem [#allocation6], %s222
        %p224 = pneg %p92
        %p225 = pneg %p89
        %p226 = pneg %p120
        %p227 = pneg %p117
        %s228 = sand.u32 %s107, 1
        %s229 = scalar_lea.sflag [#allocation5], %s228
        %s230 = sand.u32 %s107, 1
        %s231 = smul.addr %s230, 512
        %s232 = scalar_lea.vmem [#allocation8], %s231
        %s233 = smul.u32 32, %s27
        %s234 = smul.u32 4, %s29
        %s235 = smul.u32 64, %s29
        %s236 = smul.u32 2, %s28
        %s237 = smul.u32 32, %s27
        %s238 = smul.u32 2, %s28
        %p239 = scmp.eq.s32.totalorder %s29, 0
        // Predicated region
        $region37: #{tpu_custom_call.1} parent=27 // pred_check
          %p240 = pneg %p239
        $region38: #{tpu_custom_call.1} parent=27 // pred_check_branch
          %242 = sbr.rel (%p240) target = $region40
        $region39: #{tpu_custom_call.1} parent=27 // pred_region
          %243 = vst [vmem:[#allocation2] sm:$0xff] 0.0
          %244 = vst [vmem:[#allocation2 + $0x8] sm:$0xff] 0.0
          %245 = vst [vmem:[#allocation2 + $0x10] sm:$0xff] 0.0
          %246 = vst [vmem:[#allocation2 + $0x18] sm:$0xff] 0.0
          %247 = vst [vmem:[#allocation2 + $0x20] sm:$0xff] 0.0
          %248 = vst [vmem:[#allocation2 + $0x28] sm:$0xff] 0.0
          %249 = vst [vmem:[#allocation2 + $0x30] sm:$0xff] 0.0
          %250 = vst [vmem:[#allocation2 + $0x38] sm:$0xff] 0.0
          %251 = vst [vmem:[#allocation2 + $0x40] sm:$0xff] 0.0
          %252 = vst [vmem:[#allocation2 + $0x48] sm:$0xff] 0.0
          %253 = vst [vmem:[#allocation2 + $0x50] sm:$0xff] 0.0
          %254 = vst [vmem:[#allocation2 + $0x58] sm:$0xff] 0.0
          %255 = vst [vmem:[#allocation2 + $0x60] sm:$0xff] 0.0
          %256 = vst [vmem:[#allocation2 + $0x68] sm:$0xff] 0.0
          %257 = vst [vmem:[#allocation2 + $0x70] sm:$0xff] 0.0
          %258 = vst [vmem:[#allocation2 + $0x78] sm:$0xff] 0.0
          %259 = vst [vmem:[#allocation2 + $0x80] sm:$0xff] 0.0
          %260 = vst [vmem:[#allocation2 + $0x88] sm:$0xff] 0.0
          %261 = vst [vmem:[#allocation2 + $0x90] sm:$0xff] 0.0
          %262 = vst [vmem:[#allocation2 + $0x98] sm:$0xff] 0.0
          %263 = vst [vmem:[#allocation2 + $0xa0] sm:$0xff] 0.0
          %264 = vst [vmem:[#allocation2 + $0xa8] sm:$0xff] 0.0
          %265 = vst [vmem:[#allocation2 + $0xb0] sm:$0xff] 0.0
          %266 = vst [vmem:[#allocation2 + $0xb8] sm:$0xff] 0.0
          %267 = vst [vmem:[#allocation2 + $0xc0] sm:$0xff] 0.0
          %268 = vst [vmem:[#allocation2 + $0xc8] sm:$0xff] 0.0
          %269 = vst [vmem:[#allocation2 + $0xd0] sm:$0xff] 0.0
          %270 = vst [vmem:[#allocation2 + $0xd8] sm:$0xff] 0.0
          %271 = vst [vmem:[#allocation2 + $0xe0] sm:$0xff] 0.0
          %272 = vst [vmem:[#allocation2 + $0xe8] sm:$0xff] 0.0
          %273 = vst [vmem:[#allocation2 + $0xf0] sm:$0xff] 0.0
          %274 = vst [vmem:[#allocation2 + $0xf8] sm:$0xff] 0.0
          %275 = vst [vmem:[#allocation2 + $0x100] sm:$0xff] 0.0
          %276 = vst [vmem:[#allocation2 + $0x108] sm:$0xff] 0.0
          %277 = vst [vmem:[#allocation2 + $0x110] sm:$0xff] 0.0
          %278 = vst [vmem:[#allocation2 + $0x118] sm:$0xff] 0.0
          %279 = vst [vmem:[#allocation2 + $0x120] sm:$0xff] 0.0
          %280 = vst [vmem:[#allocation2 + $0x128] sm:$0xff] 0.0
          %281 = vst [vmem:[#allocation2 + $0x130] sm:$0xff] 0.0
          %282 = vst [vmem:[#allocation2 + $0x138] sm:$0xff] 0.0
          %283 = vst [vmem:[#allocation2 + $0x140] sm:$0xff] 0.0
          %284 = vst [vmem:[#allocation2 + $0x148] sm:$0xff] 0.0
          %285 = vst [vmem:[#allocation2 + $0x150] sm:$0xff] 0.0
          %286 = vst [vmem:[#allocation2 + $0x158] sm:$0xff] 0.0
          %287 = vst [vmem:[#allocation2 + $0x160] sm:$0xff] 0.0
          %288 = vst [vmem:[#allocation2 + $0x168] sm:$0xff] 0.0
          %289 = vst [vmem:[#allocation2 + $0x170] sm:$0xff] 0.0
          %290 = vst [vmem:[#allocation2 + $0x178] sm:$0xff] 0.0
          %291 = vst [vmem:[#allocation2 + $0x180] sm:$0xff] 0.0
          %292 = vst [vmem:[#allocation2 + $0x188] sm:$0xff] 0.0
          %293 = vst [vmem:[#allocation2 + $0x190] sm:$0xff] 0.0
          %294 = vst [vmem:[#allocation2 + $0x198] sm:$0xff] 0.0
          %295 = vst [vmem:[#allocation2 + $0x1a0] sm:$0xff] 0.0
          %296 = vst [vmem:[#allocation2 + $0x1a8] sm:$0xff] 0.0
          %297 = vst [vmem:[#allocation2 + $0x1b0] sm:$0xff] 0.0
          %298 = vst [vmem:[#allocation2 + $0x1b8] sm:$0xff] 0.0
          %299 = vst [vmem:[#allocation2 + $0x1c0] sm:$0xff] 0.0
          %300 = vst [vmem:[#allocation2 + $0x1c8] sm:$0xff] 0.0
          %301 = vst [vmem:[#allocation2 + $0x1d0] sm:$0xff] 0.0
          %302 = vst [vmem:[#allocation2 + $0x1d8] sm:$0xff] 0.0
          %303 = vst [vmem:[#allocation2 + $0x1e0] sm:$0xff] 0.0
          %304 = vst [vmem:[#allocation2 + $0x1e8] sm:$0xff] 0.0
          %305 = vst [vmem:[#allocation2 + $0x1f0] sm:$0xff] 0.0
          %306 = vst [vmem:[#allocation2 + $0x1f8] sm:$0xff] 0.0
        $region40: #{tpu_custom_call.1} parent=27 // pred_fallthru
          _
        %v307 = vld [vmem:[#allocation2] sm:$0xff]
        %v308 = vld [vmem:[#allocation2 + $0x8] sm:$0xff]
        %v309 = vld [vmem:[#allocation2 + $0x10] sm:$0xff]
        %v310 = vld [vmem:[#allocation2 + $0x18] sm:$0xff]
        %v311 = vld [vmem:[#allocation2 + $0x20] sm:$0xff]
        %v312 = vld [vmem:[#allocation2 + $0x28] sm:$0xff]
        %v313 = vld [vmem:[#allocation2 + $0x30] sm:$0xff]
        %v314 = vld [vmem:[#allocation2 + $0x38] sm:$0xff]
        %v315 = vld [vmem:[#allocation2 + $0x40] sm:$0xff]
        %v316 = vld [vmem:[#allocation2 + $0x48] sm:$0xff]
        %v317 = vld [vmem:[#allocation2 + $0x50] sm:$0xff]
        %v318 = vld [vmem:[#allocation2 + $0x58] sm:$0xff]
        %v319 = vld [vmem:[#allocation2 + $0x60] sm:$0xff]
        %v320 = vld [vmem:[#allocation2 + $0x68] sm:$0xff]
        %v321 = vld [vmem:[#allocation2 + $0x70] sm:$0xff]
        %v322 = vld [vmem:[#allocation2 + $0x78] sm:$0xff]
        %v323 = vld [vmem:[#allocation2 + $0x80] sm:$0xff]
        %v324 = vld [vmem:[#allocation2 + $0x88] sm:$0xff]
        %v325 = vld [vmem:[#allocation2 + $0x90] sm:$0xff]
        %v326 = vld [vmem:[#allocation2 + $0x98] sm:$0xff]
        %v327 = vld [vmem:[#allocation2 + $0xa0] sm:$0xff]
        %v328 = vld [vmem:[#allocation2 + $0xa8] sm:$0xff]
        %v329 = vld [vmem:[#allocation2 + $0xb0] sm:$0xff]
        %v330 = vld [vmem:[#allocation2 + $0xb8] sm:$0xff]
        %v331 = vld [vmem:[#allocation2 + $0xc0] sm:$0xff]
        %v332 = vld [vmem:[#allocation2 + $0xc8] sm:$0xff]
        %v333 = vld [vmem:[#allocation2 + $0xd0] sm:$0xff]
        %v334 = vld [vmem:[#allocation2 + $0xd8] sm:$0xff]
        %v335 = vld [vmem:[#allocation2 + $0xe0] sm:$0xff]
        %v336 = vld [vmem:[#allocation2 + $0xe8] sm:$0xff]
        %v337 = vld [vmem:[#allocation2 + $0xf0] sm:$0xff]
        %v338 = vld [vmem:[#allocation2 + $0xf8] sm:$0xff]
        %v339 = vld [vmem:[#allocation2 + $0x100] sm:$0xff]
        %v340 = vld [vmem:[#allocation2 + $0x108] sm:$0xff]
        %v341 = vld [vmem:[#allocation2 + $0x110] sm:$0xff]
        %v342 = vld [vmem:[#allocation2 + $0x118] sm:$0xff]
        %v343 = vld [vmem:[#allocation2 + $0x120] sm:$0xff]
        %v344 = vld [vmem:[#allocation2 + $0x128] sm:$0xff]
        %v345 = vld [vmem:[#allocation2 + $0x130] sm:$0xff]
        %v346 = vld [vmem:[#allocation2 + $0x138] sm:$0xff]
        %v347 = vld [vmem:[#allocation2 + $0x140] sm:$0xff]
        %v348 = vld [vmem:[#allocation2 + $0x148] sm:$0xff]
        %v349 = vld [vmem:[#allocation2 + $0x150] sm:$0xff]
        %v350 = vld [vmem:[#allocation2 + $0x158] sm:$0xff]
        %v351 = vld [vmem:[#allocation2 + $0x160] sm:$0xff]
        %v352 = vld [vmem:[#allocation2 + $0x168] sm:$0xff]
        %v353 = vld [vmem:[#allocation2 + $0x170] sm:$0xff]
        %v354 = vld [vmem:[#allocation2 + $0x178] sm:$0xff]
        %v355 = vld [vmem:[#allocation2 + $0x180] sm:$0xff]
        %v356 = vld [vmem:[#allocation2 + $0x188] sm:$0xff]
        %v357 = vld [vmem:[#allocation2 + $0x190] sm:$0xff]
        %v358 = vld [vmem:[#allocation2 + $0x198] sm:$0xff]
        %v359 = vld [vmem:[#allocation2 + $0x1a0] sm:$0xff]
        %v360 = vld [vmem:[#allocation2 + $0x1a8] sm:$0xff]
        %v361 = vld [vmem:[#allocation2 + $0x1b0] sm:$0xff]
        %v362 = vld [vmem:[#allocation2 + $0x1b8] sm:$0xff]
        %v363 = vld [vmem:[#allocation2 + $0x1c0] sm:$0xff]
        %v364 = vld [vmem:[#allocation2 + $0x1c8] sm:$0xff]
        %v365 = vld [vmem:[#allocation2 + $0x1d0] sm:$0xff]
        %v366 = vld [vmem:[#allocation2 + $0x1d8] sm:$0xff]
        %v367 = vld [vmem:[#allocation2 + $0x1e0] sm:$0xff]
        %v368 = vld [vmem:[#allocation2 + $0x1e8] sm:$0xff]
        %v369 = vld [vmem:[#allocation2 + $0x1f0] sm:$0xff]
        %v370 = vld [vmem:[#allocation2 + $0x1f8] sm:$0xff]
        %v371 = vld [vmem:[%s198] sm:$0xff]
        %v372 = vld [vmem:[%s198 + $0x8] sm:$0xff]
        %v373 = vld [vmem:[%s198 + $0x10] sm:$0xff]
        %v374 = vld [vmem:[%s198 + $0x18] sm:$0xff]
        %v375 = vld [vmem:[%s198 + $0x20] sm:$0xff]
        %v376 = vld [vmem:[%s198 + $0x28] sm:$0xff]
        %v377 = vld [vmem:[%s198 + $0x30] sm:$0xff]
        %v378 = vld [vmem:[%s198 + $0x38] sm:$0xff]
        %v379 = vld [vmem:[%s198 + $0x40] sm:$0xff]
        %v380 = vld [vmem:[%s198 + $0x48] sm:$0xff]
        %v381 = vld [vmem:[%s198 + $0x50] sm:$0xff]
        %v382 = vld [vmem:[%s198 + $0x58] sm:$0xff]
        %v383 = vld [vmem:[%s198 + $0x60] sm:$0xff]
        %v384 = vld [vmem:[%s198 + $0x68] sm:$0xff]
        %v385 = vld [vmem:[%s198 + $0x70] sm:$0xff]
        %v386 = vld [vmem:[%s198 + $0x78] sm:$0xff]
        %v387 = vld [vmem:[%s198 + $0x80] sm:$0xff]
        %v388 = vld [vmem:[%s198 + $0x88] sm:$0xff]
        %v389 = vld [vmem:[%s198 + $0x90] sm:$0xff]
        %v390 = vld [vmem:[%s198 + $0x98] sm:$0xff]
        %v391 = vld [vmem:[%s198 + $0xa0] sm:$0xff]
        %v392 = vld [vmem:[%s198 + $0xa8] sm:$0xff]
        %v393 = vld [vmem:[%s198 + $0xb0] sm:$0xff]
        %v394 = vld [vmem:[%s198 + $0xb8] sm:$0xff]
        %v395 = vld [vmem:[%s198 + $0xc0] sm:$0xff]
        %v396 = vld [vmem:[%s198 + $0xc8] sm:$0xff]
        %v397 = vld [vmem:[%s198 + $0xd0] sm:$0xff]
        %v398 = vld [vmem:[%s198 + $0xd8] sm:$0xff]
        %v399 = vld [vmem:[%s198 + $0xe0] sm:$0xff]
        %v400 = vld [vmem:[%s198 + $0xe8] sm:$0xff]
        %v401 = vld [vmem:[%s198 + $0xf0] sm:$0xff]
        %v402 = vld [vmem:[%s198 + $0xf8] sm:$0xff]
        %v403 = vld [vmem:[%s198 + $0x100] sm:$0xff]
        %v404 = vld [vmem:[%s198 + $0x108] sm:$0xff]
        %v405 = vld [vmem:[%s198 + $0x110] sm:$0xff]
        %v406 = vld [vmem:[%s198 + $0x118] sm:$0xff]
        %v407 = vld [vmem:[%s198 + $0x120] sm:$0xff]
        %v408 = vld [vmem:[%s198 + $0x128] sm:$0xff]
        %v409 = vld [vmem:[%s198 + $0x130] sm:$0xff]
        %v410 = vld [vmem:[%s198 + $0x138] sm:$0xff]
        %v411 = vld [vmem:[%s198 + $0x140] sm:$0xff]
        %v412 = vld [vmem:[%s198 + $0x148] sm:$0xff]
        %v413 = vld [vmem:[%s198 + $0x150] sm:$0xff]
        %v414 = vld [vmem:[%s198 + $0x158] sm:$0xff]
        %v415 = vld [vmem:[%s198 + $0x160] sm:$0xff]
        %v416 = vld [vmem:[%s198 + $0x168] sm:$0xff]
        %v417 = vld [vmem:[%s198 + $0x170] sm:$0xff]
        %v418 = vld [vmem:[%s198 + $0x178] sm:$0xff]
        %v419 = vld [vmem:[%s198 + $0x180] sm:$0xff]
        %v420 = vld [vmem:[%s198 + $0x188] sm:$0xff]
        %v421 = vld [vmem:[%s198 + $0x190] sm:$0xff]
        %v422 = vld [vmem:[%s198 + $0x198] sm:$0xff]
        %v423 = vld [vmem:[%s198 + $0x1a0] sm:$0xff]
        %v424 = vld [vmem:[%s198 + $0x1a8] sm:$0xff]
        %v425 = vld [vmem:[%s198 + $0x1b0] sm:$0xff]
        %v426 = vld [vmem:[%s198 + $0x1b8] sm:$0xff]
        %v427 = vld [vmem:[%s198 + $0x1c0] sm:$0xff]
        %v428 = vld [vmem:[%s198 + $0x1c8] sm:$0xff]
        %v429 = vld [vmem:[%s198 + $0x1d0] sm:$0xff]
        %v430 = vld [vmem:[%s198 + $0x1d8] sm:$0xff]
        %v431 = vld [vmem:[%s198 + $0x1e0] sm:$0xff]
        %v432 = vld [vmem:[%s198 + $0x1e8] sm:$0xff]
        %v433 = vld [vmem:[%s198 + $0x1f0] sm:$0xff]
        %v434 = vld [vmem:[%s198 + $0x1f8] sm:$0xff]
        %v435 = vld [vmem:[%s198 + $0x200] sm:$0xff]
        %v436 = vld [vmem:[%s198 + $0x208] sm:$0xff]
        %v437 = vld [vmem:[%s198 + $0x210] sm:$0xff]
        %v438 = vld [vmem:[%s198 + $0x218] sm:$0xff]
        %v439 = vld [vmem:[%s198 + $0x220] sm:$0xff]
        %v440 = vld [vmem:[%s198 + $0x228] sm:$0xff]
        %v441 = vld [vmem:[%s198 + $0x230] sm:$0xff]
        %v442 = vld [vmem:[%s198 + $0x238] sm:$0xff]
        %v443 = vld [vmem:[%s198 + $0x240] sm:$0xff]
        %v444 = vld [vmem:[%s198 + $0x248] sm:$0xff]
        %v445 = vld [vmem:[%s198 + $0x250] sm:$0xff]
        %v446 = vld [vmem:[%s198 + $0x258] sm:$0xff]
        %v447 = vld [vmem:[%s198 + $0x260] sm:$0xff]
        %v448 = vld [vmem:[%s198 + $0x268] sm:$0xff]
        %v449 = vld [vmem:[%s198 + $0x270] sm:$0xff]
        %v450 = vld [vmem:[%s198 + $0x278] sm:$0xff]
        %v451 = vld [vmem:[%s198 + $0x280] sm:$0xff]
        %v452 = vld [vmem:[%s198 + $0x288] sm:$0xff]
        %v453 = vld [vmem:[%s198 + $0x290] sm:$0xff]
        %v454 = vld [vmem:[%s198 + $0x298] sm:$0xff]
        %v455 = vld [vmem:[%s198 + $0x2a0] sm:$0xff]
        %v456 = vld [vmem:[%s198 + $0x2a8] sm:$0xff]
        %v457 = vld [vmem:[%s198 + $0x2b0] sm:$0xff]
        %v458 = vld [vmem:[%s198 + $0x2b8] sm:$0xff]
        %v459 = vld [vmem:[%s198 + $0x2c0] sm:$0xff]
        %v460 = vld [vmem:[%s198 + $0x2c8] sm:$0xff]
        %v461 = vld [vmem:[%s198 + $0x2d0] sm:$0xff]
        %v462 = vld [vmem:[%s198 + $0x2d8] sm:$0xff]
        %v463 = vld [vmem:[%s198 + $0x2e0] sm:$0xff]
        %v464 = vld [vmem:[%s198 + $0x2e8] sm:$0xff]
        %v465 = vld [vmem:[%s198 + $0x2f0] sm:$0xff]
        %v466 = vld [vmem:[%s198 + $0x2f8] sm:$0xff]
        %v467 = vld [vmem:[%s198 + $0x300] sm:$0xff]
        %v468 = vld [vmem:[%s198 + $0x308] sm:$0xff]
        %v469 = vld [vmem:[%s198 + $0x310] sm:$0xff]
        %v470 = vld [vmem:[%s198 + $0x318] sm:$0xff]
        %v471 = vld [vmem:[%s198 + $0x320] sm:$0xff]
        %v472 = vld [vmem:[%s198 + $0x328] sm:$0xff]
        %v473 = vld [vmem:[%s198 + $0x330] sm:$0xff]
        %v474 = vld [vmem:[%s198 + $0x338] sm:$0xff]
        %v475 = vld [vmem:[%s198 + $0x340] sm:$0xff]
        %v476 = vld [vmem:[%s198 + $0x348] sm:$0xff]
        %v477 = vld [vmem:[%s198 + $0x350] sm:$0xff]
        %v478 = vld [vmem:[%s198 + $0x358] sm:$0xff]
        %v479 = vld [vmem:[%s198 + $0x360] sm:$0xff]
        %v480 = vld [vmem:[%s198 + $0x368] sm:$0xff]
        %v481 = vld [vmem:[%s198 + $0x370] sm:$0xff]
        %v482 = vld [vmem:[%s198 + $0x378] sm:$0xff]
        %v483 = vld [vmem:[%s198 + $0x380] sm:$0xff]
        %v484 = vld [vmem:[%s198 + $0x388] sm:$0xff]
        %v485 = vld [vmem:[%s198 + $0x390] sm:$0xff]
        %v486 = vld [vmem:[%s198 + $0x398] sm:$0xff]
        %v487 = vld [vmem:[%s198 + $0x3a0] sm:$0xff]
        %v488 = vld [vmem:[%s198 + $0x3a8] sm:$0xff]
        %v489 = vld [vmem:[%s198 + $0x3b0] sm:$0xff]
        %v490 = vld [vmem:[%s198 + $0x3b8] sm:$0xff]
        %v491 = vld [vmem:[%s198 + $0x3c0] sm:$0xff]
        %v492 = vld [vmem:[%s198 + $0x3c8] sm:$0xff]
        %v493 = vld [vmem:[%s198 + $0x3d0] sm:$0xff]
        %v494 = vld [vmem:[%s198 + $0x3d8] sm:$0xff]
        %v495 = vld [vmem:[%s198 + $0x3e0] sm:$0xff]
        %v496 = vld [vmem:[%s198 + $0x3e8] sm:$0xff]
        %v497 = vld [vmem:[%s198 + $0x3f0] sm:$0xff]
        %v498 = vld [vmem:[%s198 + $0x3f8] sm:$0xff]
        %v499 = vld [vmem:[%s207] sm:$0xff]
        %v500 = vld [vmem:[%s207 + $0x8] sm:$0xff]
        %v501 = vld [vmem:[%s207 + $0x10] sm:$0xff]
        %v502 = vld [vmem:[%s207 + $0x18] sm:$0xff]
        %v503 = vld [vmem:[%s207 + $0x20] sm:$0xff]
        %v504 = vld [vmem:[%s207 + $0x28] sm:$0xff]
        %v505 = vld [vmem:[%s207 + $0x30] sm:$0xff]
        %v506 = vld [vmem:[%s207 + $0x38] sm:$0xff]
        %v507 = vld [vmem:[%s207 + $0x40] sm:$0xff]
        %v508 = vld [vmem:[%s207 + $0x48] sm:$0xff]
        %v509 = vld [vmem:[%s207 + $0x50] sm:$0xff]
        %v510 = vld [vmem:[%s207 + $0x58] sm:$0xff]
        %v511 = vld [vmem:[%s207 + $0x60] sm:$0xff]
        %v512 = vld [vmem:[%s207 + $0x68] sm:$0xff]
        %v513 = vld [vmem:[%s207 + $0x70] sm:$0xff]
        %v514 = vld [vmem:[%s207 + $0x78] sm:$0xff]
        %v515 = vld [vmem:[%s207 + $0x80] sm:$0xff]
        %v516 = vld [vmem:[%s207 + $0x88] sm:$0xff]
        %v517 = vld [vmem:[%s207 + $0x90] sm:$0xff]
        %v518 = vld [vmem:[%s207 + $0x98] sm:$0xff]
        %v519 = vld [vmem:[%s207 + $0xa0] sm:$0xff]
        %v520 = vld [vmem:[%s207 + $0xa8] sm:$0xff]
        %v521 = vld [vmem:[%s207 + $0xb0] sm:$0xff]
        %v522 = vld [vmem:[%s207 + $0xb8] sm:$0xff]
        %v523 = vld [vmem:[%s207 + $0xc0] sm:$0xff]
        %v524 = vld [vmem:[%s207 + $0xc8] sm:$0xff]
        %v525 = vld [vmem:[%s207 + $0xd0] sm:$0xff]
        %v526 = vld [vmem:[%s207 + $0xd8] sm:$0xff]
        %v527 = vld [vmem:[%s207 + $0xe0] sm:$0xff]
        %v528 = vld [vmem:[%s207 + $0xe8] sm:$0xff]
        %v529 = vld [vmem:[%s207 + $0xf0] sm:$0xff]
        %v530 = vld [vmem:[%s207 + $0xf8] sm:$0xff]
        %v531 = vld [vmem:[%s207 + $0x100] sm:$0xff]
        %v532 = vld [vmem:[%s207 + $0x108] sm:$0xff]
        %v533 = vld [vmem:[%s207 + $0x110] sm:$0xff]
        %v534 = vld [vmem:[%s207 + $0x118] sm:$0xff]
        %v535 = vld [vmem:[%s207 + $0x120] sm:$0xff]
        %v536 = vld [vmem:[%s207 + $0x128] sm:$0xff]
        %v537 = vld [vmem:[%s207 + $0x130] sm:$0xff]
        %v538 = vld [vmem:[%s207 + $0x138] sm:$0xff]
        %v539 = vld [vmem:[%s207 + $0x140] sm:$0xff]
        %v540 = vld [vmem:[%s207 + $0x148] sm:$0xff]
        %v541 = vld [vmem:[%s207 + $0x150] sm:$0xff]
        %v542 = vld [vmem:[%s207 + $0x158] sm:$0xff]
        %v543 = vld [vmem:[%s207 + $0x160] sm:$0xff]
        %v544 = vld [vmem:[%s207 + $0x168] sm:$0xff]
        %v545 = vld [vmem:[%s207 + $0x170] sm:$0xff]
        %v546 = vld [vmem:[%s207 + $0x178] sm:$0xff]
        %v547 = vld [vmem:[%s207 + $0x180] sm:$0xff]
        %v548 = vld [vmem:[%s207 + $0x188] sm:$0xff]
        %v549 = vld [vmem:[%s207 + $0x190] sm:$0xff]
        %v550 = vld [vmem:[%s207 + $0x198] sm:$0xff]
        %v551 = vld [vmem:[%s207 + $0x1a0] sm:$0xff]
        %v552 = vld [vmem:[%s207 + $0x1a8] sm:$0xff]
        %v553 = vld [vmem:[%s207 + $0x1b0] sm:$0xff]
        %v554 = vld [vmem:[%s207 + $0x1b8] sm:$0xff]
        %v555 = vld [vmem:[%s207 + $0x1c0] sm:$0xff]
        %v556 = vld [vmem:[%s207 + $0x1c8] sm:$0xff]
        %v557 = vld [vmem:[%s207 + $0x1d0] sm:$0xff]
        %v558 = vld [vmem:[%s207 + $0x1d8] sm:$0xff]
        %v559 = vld [vmem:[%s207 + $0x1e0] sm:$0xff]
        %v560 = vld [vmem:[%s207 + $0x1e8] sm:$0xff]
        %v561 = vld [vmem:[%s207 + $0x1f0] sm:$0xff]
        %v562 = vld [vmem:[%s207 + $0x1f8] sm:$0xff]
        %v563 = vld [vmem:[%s207 + $0x200] sm:$0xff]
        %v564 = vld [vmem:[%s207 + $0x208] sm:$0xff]
        %v565 = vld [vmem:[%s207 + $0x210] sm:$0xff]
        %v566 = vld [vmem:[%s207 + $0x218] sm:$0xff]
        %v567 = vld [vmem:[%s207 + $0x220] sm:$0xff]
        %v568 = vld [vmem:[%s207 + $0x228] sm:$0xff]
        %v569 = vld [vmem:[%s207 + $0x230] sm:$0xff]
        %v570 = vld [vmem:[%s207 + $0x238] sm:$0xff]
        %v571 = vld [vmem:[%s207 + $0x240] sm:$0xff]
        %v572 = vld [vmem:[%s207 + $0x248] sm:$0xff]
        %v573 = vld [vmem:[%s207 + $0x250] sm:$0xff]
        %v574 = vld [vmem:[%s207 + $0x258] sm:$0xff]
        %v575 = vld [vmem:[%s207 + $0x260] sm:$0xff]
        %v576 = vld [vmem:[%s207 + $0x268] sm:$0xff]
        %v577 = vld [vmem:[%s207 + $0x270] sm:$0xff]
        %v578 = vld [vmem:[%s207 + $0x278] sm:$0xff]
        %v579 = vld [vmem:[%s207 + $0x280] sm:$0xff]
        %v580 = vld [vmem:[%s207 + $0x288] sm:$0xff]
        %v581 = vld [vmem:[%s207 + $0x290] sm:$0xff]
        %v582 = vld [vmem:[%s207 + $0x298] sm:$0xff]
        %v583 = vld [vmem:[%s207 + $0x2a0] sm:$0xff]
        %v584 = vld [vmem:[%s207 + $0x2a8] sm:$0xff]
        %v585 = vld [vmem:[%s207 + $0x2b0] sm:$0xff]
        %v586 = vld [vmem:[%s207 + $0x2b8] sm:$0xff]
        %v587 = vld [vmem:[%s207 + $0x2c0] sm:$0xff]
        %v588 = vld [vmem:[%s207 + $0x2c8] sm:$0xff]
        %v589 = vld [vmem:[%s207 + $0x2d0] sm:$0xff]
        %v590 = vld [vmem:[%s207 + $0x2d8] sm:$0xff]
        %v591 = vld [vmem:[%s207 + $0x2e0] sm:$0xff]
        %v592 = vld [vmem:[%s207 + $0x2e8] sm:$0xff]
        %v593 = vld [vmem:[%s207 + $0x2f0] sm:$0xff]
        %v594 = vld [vmem:[%s207 + $0x2f8] sm:$0xff]
        %v595 = vld [vmem:[%s207 + $0x300] sm:$0xff]
        %v596 = vld [vmem:[%s207 + $0x308] sm:$0xff]
        %v597 = vld [vmem:[%s207 + $0x310] sm:$0xff]
        %v598 = vld [vmem:[%s207 + $0x318] sm:$0xff]
        %v599 = vld [vmem:[%s207 + $0x320] sm:$0xff]
        %v600 = vld [vmem:[%s207 + $0x328] sm:$0xff]
        %v601 = vld [vmem:[%s207 + $0x330] sm:$0xff]
        %v602 = vld [vmem:[%s207 + $0x338] sm:$0xff]
        %v603 = vld [vmem:[%s207 + $0x340] sm:$0xff]
        %v604 = vld [vmem:[%s207 + $0x348] sm:$0xff]
        %v605 = vld [vmem:[%s207 + $0x350] sm:$0xff]
        %v606 = vld [vmem:[%s207 + $0x358] sm:$0xff]
        %v607 = vld [vmem:[%s207 + $0x360] sm:$0xff]
        %v608 = vld [vmem:[%s207 + $0x368] sm:$0xff]
        %v609 = vld [vmem:[%s207 + $0x370] sm:$0xff]
        %v610 = vld [vmem:[%s207 + $0x378] sm:$0xff]
        %v611 = vld [vmem:[%s207 + $0x380] sm:$0xff]
        %v612 = vld [vmem:[%s207 + $0x388] sm:$0xff]
        %v613 = vld [vmem:[%s207 + $0x390] sm:$0xff]
        %v614 = vld [vmem:[%s207 + $0x398] sm:$0xff]
        %v615 = vld [vmem:[%s207 + $0x3a0] sm:$0xff]
        %v616 = vld [vmem:[%s207 + $0x3a8] sm:$0xff]
        %v617 = vld [vmem:[%s207 + $0x3b0] sm:$0xff]
        %v618 = vld [vmem:[%s207 + $0x3b8] sm:$0xff]
        %v619 = vld [vmem:[%s207 + $0x3c0] sm:$0xff]
        %v620 = vld [vmem:[%s207 + $0x3c8] sm:$0xff]
        %v621 = vld [vmem:[%s207 + $0x3d0] sm:$0xff]
        %v622 = vld [vmem:[%s207 + $0x3d8] sm:$0xff]
        %v623 = vld [vmem:[%s207 + $0x3e0] sm:$0xff]
        %v624 = vld [vmem:[%s207 + $0x3e8] sm:$0xff]
        %v625 = vld [vmem:[%s207 + $0x3f0] sm:$0xff]
        %v626 = vld [vmem:[%s207 + $0x3f8] sm:$0xff]
        %627 = vmatprep.subr.mxu0 %v500
        %628 = vmatpush1.msra.mxu0 %v499
        %629 = vmatprep.subr.mxu0 %v502
        %630 = vmatpush1.msra.mxu0 %v501
        %631 = vmatprep.subr.mxu0 %v504
        %632 = vmatpush1.msra.mxu0 %v503
        %633 = vmatprep.subr.mxu0 %v506
        %634 = vmatpush1.msra.mxu0 %v505
        %635 = vmatprep.subr.mxu0 %v508
        %636 = vmatpush1.msra.mxu0 %v507
        %637 = vmatprep.subr.mxu0 %v510
        %638 = vmatpush1.msra.mxu0 %v509
        %639 = vmatprep.subr.mxu0 %v512
        %640 = vmatpush1.msra.mxu0 %v511
        %641 = vmatprep.subr.mxu0 %v514
        %642 = vmatpush1.msra.mxu0 %v513
        %643 = vmatprep.subr.mxu0 %v516
        %644 = vmatpush1.msra.mxu0 %v515
        %645 = vmatprep.subr.mxu0 %v518
        %646 = vmatpush1.msra.mxu0 %v517
        %647 = vmatprep.subr.mxu0 %v520
        %648 = vmatpush1.msra.mxu0 %v519
        %649 = vmatprep.subr.mxu0 %v522
        %650 = vmatpush1.msra.mxu0 %v521
        %651 = vmatprep.subr.mxu0 %v524
        %652 = vmatpush1.msra.mxu0 %v523
        %653 = vmatprep.subr.mxu0 %v526
        %654 = vmatpush1.msra.mxu0 %v525
        %655 = vmatprep.subr.mxu0 %v528
        %656 = vmatpush1.msra.mxu0 %v527
        %657 = vmatprep.subr.mxu0 %v530
        %658 = vmatpush1.msra.mxu0 %v529
        %659 = vmatprep.subr.mxu0 %v532
        %660 = vmatpush1.msra.mxu0 %v531
        %661 = vmatprep.subr.mxu0 %v534
        %662 = vmatpush1.msra.mxu0 %v533
        %663 = vmatprep.subr.mxu0 %v536
        %664 = vmatpush1.msra.mxu0 %v535
        %665 = vmatprep.subr.mxu0 %v538
        %666 = vmatpush1.msra.mxu0 %v537
        %667 = vmatprep.subr.mxu0 %v540
        %668 = vmatpush1.msra.mxu0 %v539
        %669 = vmatprep.subr.mxu0 %v542
        %670 = vmatpush1.msra.mxu0 %v541
        %671 = vmatprep.subr.mxu0 %v544
        %672 = vmatpush1.msra.mxu0 %v543
        %673 = vmatprep.subr.mxu0 %v546
        %674 = vmatpush1.msra.mxu0 %v545
        %675 = vmatprep.subr.mxu0 %v548
        %676 = vmatpush1.msra.mxu0 %v547
        %677 = vmatprep.subr.mxu0 %v550
        %678 = vmatpush1.msra.mxu0 %v549
        %679 = vmatprep.subr.mxu0 %v552
        %680 = vmatpush1.msra.mxu0 %v551
        %681 = vmatprep.subr.mxu0 %v554
        %682 = vmatpush1.msra.mxu0 %v553
        %683 = vmatprep.subr.mxu0 %v556
        %684 = vmatpush1.msra.mxu0 %v555
        %685 = vmatprep.subr.mxu0 %v558
        %686 = vmatpush1.msra.mxu0 %v557
        %687 = vmatprep.subr.mxu0 %v560
        %688 = vmatpush1.msra.mxu0 %v559
        %689 = vmatprep.subr.mxu0 %v562
        %690 = vmatpush1.msra.mxu0 %v561
        %691 = vmatprep.mubr.f32.mxu0 %v372
        %692 = vmatmul.mubr.f32.gmra.mrb[0].mxu0 %v371
        %v693 = vpop.f32.mrb[0].mxu0
        %v694 = vadd.f32 0.0, %v693
        %v695 = vpop.f32.mrb[0].mxu0
        %v696 = vadd.f32 0.0, %v695
        %697 = vmatprep.mubr.f32.mxu0 %v376
        %698 = vmatmul.mubr.f32.gmra.mrb[0].mxu0 %v375
        %v699 = vpop.f32.mrb[0].mxu0
        %v700 = vadd.f32 0.0, %v699
        %v701 = vpop.f32.mrb[0].mxu0
        %v702 = vadd.f32 0.0, %v701
        %703 = vmatprep.mubr.f32.mxu0 %v380
        %704 = vmatmul.mubr.f32.gmra.mrb[0].mxu0 %v379
        %v705 = vpop.f32.mrb[0].mxu0
        %v706 = vadd.f32 0.0, %v705
        %v707 = vpop.f32.mrb[0].mxu0
        %v708 = vadd.f32 0.0, %v707
        %709 = vmatprep.mubr.f32.mxu0 %v384
        %710 = vmatmul.mubr.f32.gmra.mrb[0].mxu0 %v383
        %v711 = vpop.f32.mrb[0].mxu0
        %v712 = vadd.f32 0.0, %v711
        %v713 = vpop.f32.mrb[0].mxu0
        %v714 = vadd.f32 0.0, %v713
        %715 = vmatprep.mubr.f32.mxu0 %v388
        %716 = vmatmul.mubr.f32.gmra.mrb[0].mxu0 %v387
        %v717 = vpop.f32.mrb[0].mxu0
        %v718 = vadd.f32 0.0, %v717
        %v719 = vpop.f32.mrb[0].mxu0
        %v720 = vadd.f32 0.0, %v719
        %721 = vmatprep.mubr.f32.mxu0 %v392
        %722 = vmatmul.mubr.f32.gmra.mrb[0].mxu0 %v391
        %v723 = vpop.f32.mrb[0].mxu0
        %v724 = vadd.f32 0.0, %v723
        %v725 = vpop.f32.mrb[0].mxu0
        %v726 = vadd.f32 0.0, %v725
        %727 = vmatprep.mubr.f32.mxu0 %v396
        %728 = vmatmul.mubr.f32.gmra.mrb[0].mxu0 %v395
        %v729 = vpop.f32.mrb[0].mxu0
        %v730 = vadd.f32 0.0, %v729
        %v731 = vpop.f32.mrb[0].mxu0
        %v732 = vadd.f32 0.0, %v731
        %733 = vmatprep.mubr.f32.mxu0 %v400
        %734 = vmatmul.mubr.f32.gmra.mrb[0].mxu0 %v399
        %v735 = vpop.f32.mrb[0].mxu0
        %v736 = vadd.f32 0.0, %v735
        %v737 = vpop.f32.mrb[0].mxu0
        %v738 = vadd.f32 0.0, %v737
        %739 = vmatprep.mubr.f32.mxu0 %v404
        %740 = vmatmul.mubr.f32.gmra.mrb[0].mxu0 %v403
        %v741 = vpop.f32.mrb[0].mxu0
        %v742 = vadd.f32 0.0, %v741
        %v743 = vpop.f32.mrb[0].mxu0
        %v744 = vadd.f32 0.0, %v743
        %745 = vmatprep.mubr.f32.mxu0 %v408
        %746 = vmatmul.mubr.f32.gmra.mrb[0].mxu0 %v407
        %v747 = vpop.f32.mrb[0].mxu0
        %v748 = vadd.f32 0.0, %v747
        %v749 = vpop.f32.mrb[0].mxu0
        %v750 = vadd.f32 0.0, %v749
        %751 = vmatprep.mubr.f32.mxu0 %v412
        %752 = vmatmul.mubr.f32.gmra.mrb[0].mxu0 %v411
        %v753 = vpop.f32.mrb[0].mxu0
        %v754 = vadd.f32 0.0, %v753
        %v755 = vpop.f32.mrb[0].mxu0
        %v756 = vadd.f32 0.0, %v755
        %757 = vmatprep.mubr.f32.mxu0 %v416
        %758 = vmatmul.mubr.f32.gmra.mrb[0].mxu0 %v415
        %v759 = vpop.f32.mrb[0].mxu0
        %v760 = vadd.f32 0.0, %v759
        %v761 = vpop.f32.mrb[0].mxu0
        %v762 = vadd.f32 0.0, %v761
        %763 = vmatprep.mubr.f32.mxu0 %v420
        %764 = vmatmul.mubr.f32.gmra.mrb[0].mxu0 %v419
        %v765 = vpop.f32.mrb[0].mxu0
        %v766 = vadd.f32 0.0, %v765
        %v767 = vpop.f32.mrb[0].mxu0
        %v768 = vadd.f32 0.0, %v767
        %769 = vmatprep.mubr.f32.mxu0 %v424
        %770 = vmatmul.mubr.f32.gmra.mrb[0].mxu0 %v423
        %v771 = vpop.f32.mrb[0].mxu0
        %v772 = vadd.f32 0.0, %v771
        %v773 = vpop.f32.mrb[0].mxu0
        %v774 = vadd.f32 0.0, %v773
        %775 = vmatprep.mubr.f32.mxu0 %v428
        %776 = vmatmul.mubr.f32.gmra.mrb[0].mxu0 %v427
        %v777 = vpop.f32.mrb[0].mxu0
        %v778 = vadd.f32 0.0, %v777
        %v779 = vpop.f32.mrb[0].mxu0
        %v780 = vadd.f32 0.0, %v779
        %781 = vmatprep.mubr.f32.mxu0 %v432
        %782 = vmatmul.mubr.f32.gmra.mrb[0].mxu0 %v431
        %v783 = vpop.f32.mrb[0].mxu0
        %v784 = vadd.f32 0.0, %v783
        %v785 = vpop.f32.mrb[0].mxu0
        %v786 = vadd.f32 0.0, %v785
        %787 = vmatprep.mubr.f32.mxu0 %v436
        %788 = vmatmul.mubr.f32.gmra.mrb[0].mxu0 %v435
        %v789 = vpop.f32.mrb[0].mxu0
        %v790 = vadd.f32 0.0, %v789
        %v791 = vpop.f32.mrb[0].mxu0
        %v792 = vadd.f32 0.0, %v791
        %793 = vmatprep.mubr.f32.mxu0 %v440
        %794 = vmatmul.mubr.f32.gmra.mrb[0].mxu0 %v439
        %v795 = vpop.f32.mrb[0].mxu0
        %v796 = vadd.f32 0.0, %v795
        %v797 = vpop.f32.mrb[0].mxu0
        %v798 = vadd.f32 0.0, %v797
        %799 = vmatprep.mubr.f32.mxu0 %v444
        %800 = vmatmul.mubr.f32.gmra.mrb[0].mxu0 %v443
        %v801 = vpop.f32.mrb[0].mxu0
        %v802 = vadd.f32 0.0, %v801
        %v803 = vpop.f32.mrb[0].mxu0
        %v804 = vadd.f32 0.0, %v803
        %805 = vmatprep.mubr.f32.mxu0 %v448
        %806 = vmatmul.mubr.f32.gmra.mrb[0].mxu0 %v447
        %v807 = vpop.f32.mrb[0].mxu0
        %v808 = vadd.f32 0.0, %v807
        %v809 = vpop.f32.mrb[0].mxu0
        %v810 = vadd.f32 0.0, %v809
        %811 = vmatprep.mubr.f32.mxu0 %v452
        %812 = vmatmul.mubr.f32.gmra.mrb[0].mxu0 %v451
        %v813 = vpop.f32.mrb[0].mxu0
        %v814 = vadd.f32 0.0, %v813
        %v815 = vpop.f32.mrb[0].mxu0
        %v816 = vadd.f32 0.0, %v815
        %817 = vmatprep.mubr.f32.mxu0 %v456
        %818 = vmatmul.mubr.f32.gmra.mrb[0].mxu0 %v455
        %v819 = vpop.f32.mrb[0].mxu0
        %v820 = vadd.f32 0.0, %v819
        %v821 = vpop.f32.mrb[0].mxu0
        %v822 = vadd.f32 0.0, %v821
        %823 = vmatprep.mubr.f32.mxu0 %v460
        %824 = vmatmul.mubr.f32.gmra.mrb[0].mxu0 %v459
        %v825 = vpop.f32.mrb[0].mxu0
        %v826 = vadd.f32 0.0, %v825
        %v827 = vpop.f32.mrb[0].mxu0
        %v828 = vadd.f32 0.0, %v827
        %829 = vmatprep.mubr.f32.mxu0 %v464
        %830 = vmatmul.mubr.f32.gmra.mrb[0].mxu0 %v463
        %v831 = vpop.f32.mrb[0].mxu0
        %v832 = vadd.f32 0.0, %v831
        %v833 = vpop.f32.mrb[0].mxu0
        %v834 = vadd.f32 0.0, %v833
        %835 = vmatprep.mubr.f32.mxu0 %v468
        %836 = vmatmul.mubr.f32.gmra.mrb[0].mxu0 %v467
        %v837 = vpop.f32.mrb[0].mxu0
        %v838 = vadd.f32 0.0, %v837
        %v839 = vpop.f32.mrb[0].mxu0
        %v840 = vadd.f32 0.0, %v839
        %841 = vmatprep.mubr.f32.mxu0 %v472
        %842 = vmatmul.mubr.f32.gmra.mrb[0].mxu0 %v471
        %v843 = vpop.f32.mrb[0].mxu0
        %v844 = vadd.f32 0.0, %v843
        %v845 = vpop.f32.mrb[0].mxu0
        %v846 = vadd.f32 0.0, %v845
        %847 = vmatprep.mubr.f32.mxu0 %v476
        %848 = vmatmul.mubr.f32.gmra.mrb[0].mxu0 %v475
        %v849 = vpop.f32.mrb[0].mxu0
        %v850 = vadd.f32 0.0, %v849
        %v851 = vpop.f32.mrb[0].mxu0
        %v852 = vadd.f32 0.0, %v851
        %853 = vmatprep.mubr.f32.mxu0 %v480
        %854 = vmatmul.mubr.f32.gmra.mrb[0].mxu0 %v479
        %v855 = vpop.f32.mrb[0].mxu0
        %v856 = vadd.f32 0.0, %v855
        %v857 = vpop.f32.mrb[0].mxu0
        %v858 = vadd.f32 0.0, %v857
        %859 = vmatprep.mubr.f32.mxu0 %v484
        %860 = vmatmul.mubr.f32.gmra.mrb[0].mxu0 %v483
        %v861 = vpop.f32.mrb[0].mxu0
        %v862 = vadd.f32 0.0, %v861
        %v863 = vpop.f32.mrb[0].mxu0
        %v864 = vadd.f32 0.0, %v863
        %865 = vmatprep.mubr.f32.mxu0 %v488
        %866 = vmatmul.mubr.f32.gmra.mrb[0].mxu0 %v487
        %v867 = vpop.f32.mrb[0].mxu0
        %v868 = vadd.f32 0.0, %v867
        %v869 = vpop.f32.mrb[0].mxu0
        %v870 = vadd.f32 0.0, %v869
        %871 = vmatprep.mubr.f32.mxu0 %v492
        %872 = vmatmul.mubr.f32.gmra.mrb[0].mxu0 %v491
        %v873 = vpop.f32.mrb[0].mxu0
        %v874 = vadd.f32 0.0, %v873
        %v875 = vpop.f32.mrb[0].mxu0
        %v876 = vadd.f32 0.0, %v875
        %877 = vmatprep.mubr.f32.mxu0 %v496
        %878 = vmatmul.mubr.f32.gmra.mrb[0].mxu0 %v495
        %v879 = vpop.f32.mrb[0].mxu0
        %v880 = vadd.f32 0.0, %v879
        %v881 = vpop.f32.mrb[0].mxu0
        %v882 = vadd.f32 0.0, %v881
        %883 = vdwg.mxu0
        %884 = vmatprep.subr.mxu0 %v564
        %885 = vmatpush1.msra.mxu0 %v563
        %886 = vmatprep.subr.mxu0 %v566
        %887 = vmatpush1.msra.mxu0 %v565
        %888 = vmatprep.subr.mxu0 %v568
        %889 = vmatpush1.msra.mxu0 %v567
        %890 = vmatprep.subr.mxu0 %v570
        %891 = vmatpush1.msra.mxu0 %v569
        %892 = vmatprep.subr.mxu0 %v572
        %893 = vmatpush1.msra.mxu0 %v571
        %894 = vmatprep.subr.mxu0 %v574
        %895 = vmatpush1.msra.mxu0 %v573
        %896 = vmatprep.subr.mxu0 %v576
        %897 = vmatpush1.msra.mxu0 %v575
        %898 = vmatprep.subr.mxu0 %v578
        %899 = vmatpush1.msra.mxu0 %v577
        %900 = vmatprep.subr.mxu0 %v580
        %901 = vmatpush1.msra.mxu0 %v579
        %902 = vmatprep.subr.mxu0 %v582
        %903 = vmatpush1.msra.mxu0 %v581
        %904 = vmatprep.subr.mxu0 %v584
        %905 = vmatpush1.msra.mxu0 %v583
        %906 = vmatprep.subr.mxu0 %v586
        %907 = vmatpush1.msra.mxu0 %v585
        %908 = vmatprep.subr.mxu0 %v588
        %909 = vmatpush1.msra.mxu0 %v587
        %910 = vmatprep.subr.mxu0 %v590
        %911 = vmatpush1.msra.mxu0 %v589
        %912 = vmatprep.subr.mxu0 %v592
        %913 = vmatpush1.msra.mxu0 %v591
        %914 = vmatprep.subr.mxu0 %v594
        %915 = vmatpush1.msra.mxu0 %v593
        %916 = vmatprep.subr.mxu0 %v596
        %917 = vmatpush1.msra.mxu0 %v595
        %918 = vmatprep.subr.mxu0 %v598
        %919 = vmatpush1.msra.mxu0 %v597
        %920 = vmatprep.subr.mxu0 %v600
        %921 = vmatpush1.msra.mxu0 %v599
        %922 = vmatprep.subr.mxu0 %v602
        %923 = vmatpush1.msra.mxu0 %v601
        %924 = vmatprep.subr.mxu0 %v604
        %925 = vmatpush1.msra.mxu0 %v603
        %926 = vmatprep.subr.mxu0 %v606
        %927 = vmatpush1.msra.mxu0 %v605
        %928 = vmatprep.subr.mxu0 %v608
        %929 = vmatpush1.msra.mxu0 %v607
        %930 = vmatprep.subr.mxu0 %v610
        %931 = vmatpush1.msra.mxu0 %v609
        %932 = vmatprep.subr.mxu0 %v612
        %933 = vmatpush1.msra.mxu0 %v611
        %934 = vmatprep.subr.mxu0 %v614
        %935 = vmatpush1.msra.mxu0 %v613
        %936 = vmatprep.subr.mxu0 %v616
        %937 = vmatpush1.msra.mxu0 %v615
        %938 = vmatprep.subr.mxu0 %v618
        %939 = vmatpush1.msra.mxu0 %v617
        %940 = vmatprep.subr.mxu0 %v620
        %941 = vmatpush1.msra.mxu0 %v619
        %942 = vmatprep.subr.mxu0 %v622
        %943 = vmatpush1.msra.mxu0 %v621
        %944 = vmatprep.subr.mxu0 %v624
        %945 = vmatpush1.msra.mxu0 %v623
        %946 = vmatprep.subr.mxu0 %v626
        %947 = vmatpush1.msra.mxu0 %v625
        %948 = vmatprep.mubr.f32.mxu0 %v374
        %949 = vmatmul.mubr.f32.gmra.mrb[0].mxu0 %v373
        %v950 = vpop.f32.mrb[0].mxu0
        %v951 = vadd.f32 %v694, %v950
        %v952 = vpop.f32.mrb[0].mxu0
        %v953 = vadd.f32 %v696, %v952
        %954 = vmatprep.mubr.f32.mxu0 %v378
        %955 = vmatmul.mubr.f32.gmra.mrb[0].mxu0 %v377
        %v956 = vpop.f32.mrb[0].mxu0
        %v957 = vadd.f32 %v700, %v956
        %v958 = vpop.f32.mrb[0].mxu0
        %v959 = vadd.f32 %v702, %v958
        %960 = vmatprep.mubr.f32.mxu0 %v382
        %961 = vmatmul.mubr.f32.gmra.mrb[0].mxu0 %v381
        %v962 = vpop.f32.mrb[0].mxu0
        %v963 = vadd.f32 %v706, %v962
        %v964 = vpop.f32.mrb[0].mxu0
        %v965 = vadd.f32 %v708, %v964
        %966 = vmatprep.mubr.f32.mxu0 %v386
        %967 = vmatmul.mubr.f32.gmra.mrb[0].mxu0 %v385
        %v968 = vpop.f32.mrb[0].mxu0
        %v969 = vadd.f32 %v712, %v968
        %v970 = vpop.f32.mrb[0].mxu0
        %v971 = vadd.f32 %v714, %v970
        %972 = vmatprep.mubr.f32.mxu0 %v390
        %973 = vmatmul.mubr.f32.gmra.mrb[0].mxu0 %v389
        %v974 = vpop.f32.mrb[0].mxu0
        %v975 = vadd.f32 %v718, %v974
        %v976 = vpop.f32.mrb[0].mxu0
        %v977 = vadd.f32 %v720, %v976
        %978 = vmatprep.mubr.f32.mxu0 %v394
        %979 = vmatmul.mubr.f32.gmra.mrb[0].mxu0 %v393
        %v980 = vpop.f32.mrb[0].mxu0
        %v981 = vadd.f32 %v724, %v980
        %v982 = vpop.f32.mrb[0].mxu0
        %v983 = vadd.f32 %v726, %v982
        %984 = vmatprep.mubr.f32.mxu0 %v398
        %985 = vmatmul.mubr.f32.gmra.mrb[0].mxu0 %v397
        %v986 = vpop.f32.mrb[0].mxu0
        %v987 = vadd.f32 %v730, %v986
        %v988 = vpop.f32.mrb[0].mxu0
        %v989 = vadd.f32 %v732, %v988
        %990 = vmatprep.mubr.f32.mxu0 %v402
        %991 = vmatmul.mubr.f32.gmra.mrb[0].mxu0 %v401
        %v992 = vpop.f32.mrb[0].mxu0
        %v993 = vadd.f32 %v736, %v992
        %v994 = vpop.f32.mrb[0].mxu0
        %v995 = vadd.f32 %v738, %v994
        %996 = vmatprep.mubr.f32.mxu0 %v406
        %997 = vmatmul.mubr.f32.gmra.mrb[0].mxu0 %v405
        %v998 = vpop.f32.mrb[0].mxu0
        %v999 = vadd.f32 %v742, %v998
        %v1000 = vpop.f32.mrb[0].mxu0
        %v1001 = vadd.f32 %v744, %v1000
        %1002 = vmatprep.mubr.f32.mxu0 %v410
        %1003 = vmatmul.mubr.f32.gmra.mrb[0].mxu0 %v409
        %v1004 = vpop.f32.mrb[0].mxu0
        %v1005 = vadd.f32 %v748, %v1004
        %v1006 = vpop.f32.mrb[0].mxu0
        %v1007 = vadd.f32 %v750, %v1006
        %1008 = vmatprep.mubr.f32.mxu0 %v414
        %1009 = vmatmul.mubr.f32.gmra.mrb[0].mxu0 %v413
        %v1010 = vpop.f32.mrb[0].mxu0
        %v1011 = vadd.f32 %v754, %v1010
        %v1012 = vpop.f32.mrb[0].mxu0
        %v1013 = vadd.f32 %v756, %v1012
        %1014 = vmatprep.mubr.f32.mxu0 %v418
        %1015 = vmatmul.mubr.f32.gmra.mrb[0].mxu0 %v417
        %v1016 = vpop.f32.mrb[0].mxu0
        %v1017 = vadd.f32 %v760, %v1016
        %v1018 = vpop.f32.mrb[0].mxu0
        %v1019 = vadd.f32 %v762, %v1018
        %1020 = vmatprep.mubr.f32.mxu0 %v422
        %1021 = vmatmul.mubr.f32.gmra.mrb[0].mxu0 %v421
        %v1022 = vpop.f32.mrb[0].mxu0
        %v1023 = vadd.f32 %v766, %v1022
        %v1024 = vpop.f32.mrb[0].mxu0
        %v1025 = vadd.f32 %v768, %v1024
        %1026 = vmatprep.mubr.f32.mxu0 %v426
        %1027 = vmatmul.mubr.f32.gmra.mrb[0].mxu0 %v425
        %v1028 = vpop.f32.mrb[0].mxu0
        %v1029 = vadd.f32 %v772, %v1028
        %v1030 = vpop.f32.mrb[0].mxu0
        %v1031 = vadd.f32 %v774, %v1030
        %1032 = vmatprep.mubr.f32.mxu0 %v430
        %1033 = vmatmul.mubr.f32.gmra.mrb[0].mxu0 %v429
        %v1034 = vpop.f32.mrb[0].mxu0
        %v1035 = vadd.f32 %v778, %v1034
        %v1036 = vpop.f32.mrb[0].mxu0
        %v1037 = vadd.f32 %v780, %v1036
        %1038 = vmatprep.mubr.f32.mxu0 %v434
        %1039 = vmatmul.mubr.f32.gmra.mrb[0].mxu0 %v433
        %v1040 = vpop.f32.mrb[0].mxu0
        %v1041 = vadd.f32 %v784, %v1040
        %v1042 = vpop.f32.mrb[0].mxu0
        %v1043 = vadd.f32 %v786, %v1042
        %1044 = vmatprep.mubr.f32.mxu0 %v438
        %1045 = vmatmul.mubr.f32.gmra.mrb[0].mxu0 %v437
        %v1046 = vpop.f32.mrb[0].mxu0
        %v1047 = vadd.f32 %v790, %v1046
        %v1048 = vpop.f32.mrb[0].mxu0
        %v1049 = vadd.f32 %v792, %v1048
        %1050 = vmatprep.mubr.f32.mxu0 %v442
        %1051 = vmatmul.mubr.f32.gmra.mrb[0].mxu0 %v441
        %v1052 = vpop.f32.mrb[0].mxu0
        %v1053 = vadd.f32 %v796, %v1052
        %v1054 = vpop.f32.mrb[0].mxu0
        %v1055 = vadd.f32 %v798, %v1054
        %1056 = vmatprep.mubr.f32.mxu0 %v446
        %1057 = vmatmul.mubr.f32.gmra.mrb[0].mxu0 %v445
        %v1058 = vpop.f32.mrb[0].mxu0
        %v1059 = vadd.f32 %v802, %v1058
        %v1060 = vpop.f32.mrb[0].mxu0
        %v1061 = vadd.f32 %v804, %v1060
        %1062 = vmatprep.mubr.f32.mxu0 %v450
        %1063 = vmatmul.mubr.f32.gmra.mrb[0].mxu0 %v449
        %v1064 = vpop.f32.mrb[0].mxu0
        %v1065 = vadd.f32 %v808, %v1064
        %v1066 = vpop.f32.mrb[0].mxu0
        %v1067 = vadd.f32 %v810, %v1066
        %1068 = vmatprep.mubr.f32.mxu0 %v454
        %1069 = vmatmul.mubr.f32.gmra.mrb[0].mxu0 %v453
        %v1070 = vpop.f32.mrb[0].mxu0
        %v1071 = vadd.f32 %v814, %v1070
        %v1072 = vpop.f32.mrb[0].mxu0
        %v1073 = vadd.f32 %v816, %v1072
        %1074 = vmatprep.mubr.f32.mxu0 %v458
        %1075 = vmatmul.mubr.f32.gmra.mrb[0].mxu0 %v457
        %v1076 = vpop.f32.mrb[0].mxu0
        %v1077 = vadd.f32 %v820, %v1076
        %v1078 = vpop.f32.mrb[0].mxu0
        %v1079 = vadd.f32 %v822, %v1078
        %1080 = vmatprep.mubr.f32.mxu0 %v462
        %1081 = vmatmul.mubr.f32.gmra.mrb[0].mxu0 %v461
        %v1082 = vpop.f32.mrb[0].mxu0
        %v1083 = vadd.f32 %v826, %v1082
        %v1084 = vpop.f32.mrb[0].mxu0
        %v1085 = vadd.f32 %v828, %v1084
        %1086 = vmatprep.mubr.f32.mxu0 %v466
        %1087 = vmatmul.mubr.f32.gmra.mrb[0].mxu0 %v465
        %v1088 = vpop.f32.mrb[0].mxu0
        %v1089 = vadd.f32 %v832, %v1088
        %v1090 = vpop.f32.mrb[0].mxu0
        %v1091 = vadd.f32 %v834, %v1090
        %1092 = vmatprep.mubr.f32.mxu0 %v470
        %1093 = vmatmul.mubr.f32.gmra.mrb[0].mxu0 %v469
        %v1094 = vpop.f32.mrb[0].mxu0
        %v1095 = vadd.f32 %v838, %v1094
        %v1096 = vpop.f32.mrb[0].mxu0
        %v1097 = vadd.f32 %v840, %v1096
        %1098 = vmatprep.mubr.f32.mxu0 %v474
        %1099 = vmatmul.mubr.f32.gmra.mrb[0].mxu0 %v473
        %v1100 = vpop.f32.mrb[0].mxu0
        %v1101 = vadd.f32 %v844, %v1100
        %v1102 = vpop.f32.mrb[0].mxu0
        %v1103 = vadd.f32 %v846, %v1102
        %1104 = vmatprep.mubr.f32.mxu0 %v478
        %1105 = vmatmul.mubr.f32.gmra.mrb[0].mxu0 %v477
        %v1106 = vpop.f32.mrb[0].mxu0
        %v1107 = vadd.f32 %v850, %v1106
        %v1108 = vpop.f32.mrb[0].mxu0
        %v1109 = vadd.f32 %v852, %v1108
        %1110 = vmatprep.mubr.f32.mxu0 %v482
        %1111 = vmatmul.mubr.f32.gmra.mrb[0].mxu0 %v481
        %v1112 = vpop.f32.mrb[0].mxu0
        %v1113 = vadd.f32 %v856, %v1112
        %v1114 = vpop.f32.mrb[0].mxu0
        %v1115 = vadd.f32 %v858, %v1114
        %1116 = vmatprep.mubr.f32.mxu0 %v486
        %1117 = vmatmul.mubr.f32.gmra.mrb[0].mxu0 %v485
        %v1118 = vpop.f32.mrb[0].mxu0
        %v1119 = vadd.f32 %v862, %v1118
        %v1120 = vpop.f32.mrb[0].mxu0
        %v1121 = vadd.f32 %v864, %v1120
        %1122 = vmatprep.mubr.f32.mxu0 %v490
        %1123 = vmatmul.mubr.f32.gmra.mrb[0].mxu0 %v489
        %v1124 = vpop.f32.mrb[0].mxu0
        %v1125 = vadd.f32 %v868, %v1124
        %v1126 = vpop.f32.mrb[0].mxu0
        %v1127 = vadd.f32 %v870, %v1126
        %1128 = vmatprep.mubr.f32.mxu0 %v494
        %1129 = vmatmul.mubr.f32.gmra.mrb[0].mxu0 %v493
        %v1130 = vpop.f32.mrb[0].mxu0
        %v1131 = vadd.f32 %v874, %v1130
        %v1132 = vpop.f32.mrb[0].mxu0
        %v1133 = vadd.f32 %v876, %v1132
        %1134 = vmatprep.mubr.f32.mxu0 %v498
        %1135 = vmatmul.mubr.f32.gmra.mrb[0].mxu0 %v497
        %v1136 = vpop.f32.mrb[0].mxu0
        %v1137 = vadd.f32 %v880, %v1136
        %v1138 = vpop.f32.mrb[0].mxu0
        %v1139 = vadd.f32 %v882, %v1138
        %1140 = vdwg.mxu0
        %v1141 = vadd.f32 %v307, %v951
        %v1142 = vadd.f32 %v308, %v953
        %v1143 = vadd.f32 %v309, %v957
        %v1144 = vadd.f32 %v310, %v959
        %v1145 = vadd.f32 %v311, %v963
        %v1146 = vadd.f32 %v312, %v965
        %v1147 = vadd.f32 %v313, %v969
        %v1148 = vadd.f32 %v314, %v971
        %v1149 = vadd.f32 %v315, %v975
        %v1150 = vadd.f32 %v316, %v977
        %v1151 = vadd.f32 %v317, %v981
        %v1152 = vadd.f32 %v318, %v983
        %v1153 = vadd.f32 %v319, %v987
        %v1154 = vadd.f32 %v320, %v989
        %v1155 = vadd.f32 %v321, %v993
        %v1156 = vadd.f32 %v322, %v995
        %v1157 = vadd.f32 %v323, %v999
        %v1158 = vadd.f32 %v324, %v1001
        %v1159 = vadd.f32 %v325, %v1005
        %v1160 = vadd.f32 %v326, %v1007
        %v1161 = vadd.f32 %v327, %v1011
        %v1162 = vadd.f32 %v328, %v1013
        %v1163 = vadd.f32 %v329, %v1017
        %v1164 = vadd.f32 %v330, %v1019
        %v1165 = vadd.f32 %v331, %v1023
        %v1166 = vadd.f32 %v332, %v1025
        %v1167 = vadd.f32 %v333, %v1029
        %v1168 = vadd.f32 %v334, %v1031
        %v1169 = vadd.f32 %v335, %v1035
        %v1170 = vadd.f32 %v336, %v1037
        %v1171 = vadd.f32 %v337, %v1041
        %v1172 = vadd.f32 %v338, %v1043
        %v1173 = vadd.f32 %v339, %v1047
        %v1174 = vadd.f32 %v340, %v1049
        %v1175 = vadd.f32 %v341, %v1053
        %v1176 = vadd.f32 %v342, %v1055
        %v1177 = vadd.f32 %v343, %v1059
        %v1178 = vadd.f32 %v344, %v1061
        %v1179 = vadd.f32 %v345, %v1065
        %v1180 = vadd.f32 %v346, %v1067
        %v1181 = vadd.f32 %v347, %v1071
        %v1182 = vadd.f32 %v348, %v1073
        %v1183 = vadd.f32 %v349, %v1077
        %v1184 = vadd.f32 %v350, %v1079
        %v1185 = vadd.f32 %v351, %v1083
        %v1186 = vadd.f32 %v352, %v1085
        %v1187 = vadd.f32 %v353, %v1089
        %v1188 = vadd.f32 %v354, %v1091
        %v1189 = vadd.f32 %v355, %v1095
        %v1190 = vadd.f32 %v356, %v1097
        %v1191 = vadd.f32 %v357, %v1101
        %v1192 = vadd.f32 %v358, %v1103
        %v1193 = vadd.f32 %v359, %v1107
        %v1194 = vadd.f32 %v360, %v1109
        %v1195 = vadd.f32 %v361, %v1113
        %v1196 = vadd.f32 %v362, %v1115
        %v1197 = vadd.f32 %v363, %v1119
        %v1198 = vadd.f32 %v364, %v1121
        %v1199 = vadd.f32 %v365, %v1125
        %v1200 = vadd.f32 %v366, %v1127
        %v1201 = vadd.f32 %v367, %v1131
        %v1202 = vadd.f32 %v368, %v1133
        %v1203 = vadd.f32 %v369, %v1137
        %v1204 = vadd.f32 %v370, %v1139
        %1205 = vst [vmem:[#allocation2] sm:$0xff] %v1141
        %1206 = vst [vmem:[#allocation2 + $0x8] sm:$0xff] %v1142
        %1207 = vst [vmem:[#allocation2 + $0x10] sm:$0xff] %v1143
        %1208 = vst [vmem:[#allocation2 + $0x18] sm:$0xff] %v1144
        %1209 = vst [vmem:[#allocation2 + $0x20] sm:$0xff] %v1145
        %1210 = vst [vmem:[#allocation2 + $0x28] sm:$0xff] %v1146
        %1211 = vst [vmem:[#allocation2 + $0x30] sm:$0xff] %v1147
        %1212 = vst [vmem:[#allocation2 + $0x38] sm:$0xff] %v1148
        %1213 = vst [vmem:[#allocation2 + $0x40] sm:$0xff] %v1149
        %1214 = vst [vmem:[#allocation2 + $0x48] sm:$0xff] %v1150
        %1215 = vst [vmem:[#allocation2 + $0x50] sm:$0xff] %v1151
        %1216 = vst [vmem:[#allocation2 + $0x58] sm:$0xff] %v1152
        %1217 = vst [vmem:[#allocation2 + $0x60] sm:$0xff] %v1153
        %1218 = vst [vmem:[#allocation2 + $0x68] sm:$0xff] %v1154
        %1219 = vst [vmem:[#allocation2 + $0x70] sm:$0xff] %v1155
        %1220 = vst [vmem:[#allocation2 + $0x78] sm:$0xff] %v1156
        %1221 = vst [vmem:[#allocation2 + $0x80] sm:$0xff] %v1157
        %1222 = vst [vmem:[#allocation2 + $0x88] sm:$0xff] %v1158
        %1223 = vst [vmem:[#allocation2 + $0x90] sm:$0xff] %v1159
        %1224 = vst [vmem:[#allocation2 + $0x98] sm:$0xff] %v1160
        %1225 = vst [vmem:[#allocation2 + $0xa0] sm:$0xff] %v1161
        %1226 = vst [vmem:[#allocation2 + $0xa8] sm:$0xff] %v1162
        %1227 = vst [vmem:[#allocation2 + $0xb0] sm:$0xff] %v1163
        %1228 = vst [vmem:[#allocation2 + $0xb8] sm:$0xff] %v1164
        %1229 = vst [vmem:[#allocation2 + $0xc0] sm:$0xff] %v1165
        %1230 = vst [vmem:[#allocation2 + $0xc8] sm:$0xff] %v1166
        %1231 = vst [vmem:[#allocation2 + $0xd0] sm:$0xff] %v1167
        %1232 = vst [vmem:[#allocation2 + $0xd8] sm:$0xff] %v1168
        %1233 = vst [vmem:[#allocation2 + $0xe0] sm:$0xff] %v1169
        %1234 = vst [vmem:[#allocation2 + $0xe8] sm:$0xff] %v1170
        %1235 = vst [vmem:[#allocation2 + $0xf0] sm:$0xff] %v1171
        %1236 = vst [vmem:[#allocation2 + $0xf8] sm:$0xff] %v1172
        %1237 = vst [vmem:[#allocation2 + $0x100] sm:$0xff] %v1173
        %1238 = vst [vmem:[#allocation2 + $0x108] sm:$0xff] %v1174
        %1239 = vst [vmem:[#allocation2 + $0x110] sm:$0xff] %v1175
        %1240 = vst [vmem:[#allocation2 + $0x118] sm:$0xff] %v1176
        %1241 = vst [vmem:[#allocation2 + $0x120] sm:$0xff] %v1177
        %1242 = vst [vmem:[#allocation2 + $0x128] sm:$0xff] %v1178
        %1243 = vst [vmem:[#allocation2 + $0x130] sm:$0xff] %v1179
        %1244 = vst [vmem:[#allocation2 + $0x138] sm:$0xff] %v1180
        %1245 = vst [vmem:[#allocation2 + $0x140] sm:$0xff] %v1181
        %1246 = vst [vmem:[#allocation2 + $0x148] sm:$0xff] %v1182
        %1247 = vst [vmem:[#allocation2 + $0x150] sm:$0xff] %v1183
        %1248 = vst [vmem:[#allocation2 + $0x158] sm:$0xff] %v1184
        %1249 = vst [vmem:[#allocation2 + $0x160] sm:$0xff] %v1185
        %1250 = vst [vmem:[#allocation2 + $0x168] sm:$0xff] %v1186
        %1251 = vst [vmem:[#allocation2 + $0x170] sm:$0xff] %v1187
        %1252 = vst [vmem:[#allocation2 + $0x178] sm:$0xff] %v1188
        %1253 = vst [vmem:[#allocation2 + $0x180] sm:$0xff] %v1189
        %1254 = vst [vmem:[#allocation2 + $0x188] sm:$0xff] %v1190
        %1255 = vst [vmem:[#allocation2 + $0x190] sm:$0xff] %v1191
        %1256 = vst [vmem:[#allocation2 + $0x198] sm:$0xff] %v1192
        %1257 = vst [vmem:[#allocation2 + $0x1a0] sm:$0xff] %v1193
        %1258 = vst [vmem:[#allocation2 + $0x1a8] sm:$0xff] %v1194
        %1259 = vst [vmem:[#allocation2 + $0x1b0] sm:$0xff] %v1195
        %1260 = vst [vmem:[#allocation2 + $0x1b8] sm:$0xff] %v1196
        %1261 = vst [vmem:[#allocation2 + $0x1c0] sm:$0xff] %v1197
        %1262 = vst [vmem:[#allocation2 + $0x1c8] sm:$0xff] %v1198
        %1263 = vst [vmem:[#allocation2 + $0x1d0] sm:$0xff] %v1199
        %1264 = vst [vmem:[#allocation2 + $0x1d8] sm:$0xff] %v1200
        %1265 = vst [vmem:[#allocation2 + $0x1e0] sm:$0xff] %v1201
        %1266 = vst [vmem:[#allocation2 + $0x1e8] sm:$0xff] %v1202
        %1267 = vst [vmem:[#allocation2 + $0x1f0] sm:$0xff] %v1203
        %1268 = vst [vmem:[#allocation2 + $0x1f8] sm:$0xff] %v1204
        // Predicated region
        $region41: #{tpu_custom_call.1} parent=27 // pred_check
          %p1269 = pneg %p239
        $region42: #{tpu_custom_call.1} parent=27 // pred_check_branch
          %1271 = sbr.rel (%p1269) target = $region44
        $region43: #{tpu_custom_call.1} parent=27 // pred_region
          %v1272 = vld [vmem:[#allocation2] sm:$0xff]
          %v1273 = vld [vmem:[#allocation2 + $0x8] sm:$0xff]
          %v1274 = vld [vmem:[#allocation2 + $0x10] sm:$0xff]
          %v1275 = vld [vmem:[#allocation2 + $0x18] sm:$0xff]
          %v1276 = vld [vmem:[#allocation2 + $0x20] sm:$0xff]
          %v1277 = vld [vmem:[#allocation2 + $0x28] sm:$0xff]
          %v1278 = vld [vmem:[#allocation2 + $0x30] sm:$0xff]
          %v1279 = vld [vmem:[#allocation2 + $0x38] sm:$0xff]
          %v1280 = vld [vmem:[#allocation2 + $0x40] sm:$0xff]
          %v1281 = vld [vmem:[#allocation2 + $0x48] sm:$0xff]
          %v1282 = vld [vmem:[#allocation2 + $0x50] sm:$0xff]
          %v1283 = vld [vmem:[#allocation2 + $0x58] sm:$0xff]
          %v1284 = vld [vmem:[#allocation2 + $0x60] sm:$0xff]
          %v1285 = vld [vmem:[#allocation2 + $0x68] sm:$0xff]
          %v1286 = vld [vmem:[#allocation2 + $0x70] sm:$0xff]
          %v1287 = vld [vmem:[#allocation2 + $0x78] sm:$0xff]
          %v1288 = vld [vmem:[#allocation2 + $0x80] sm:$0xff]
          %v1289 = vld [vmem:[#allocation2 + $0x88] sm:$0xff]
          %v1290 = vld [vmem:[#allocation2 + $0x90] sm:$0xff]
          %v1291 = vld [vmem:[#allocation2 + $0x98] sm:$0xff]
          %v1292 = vld [vmem:[#allocation2 + $0xa0] sm:$0xff]
          %v1293 = vld [vmem:[#allocation2 + $0xa8] sm:$0xff]
          %v1294 = vld [vmem:[#allocation2 + $0xb0] sm:$0xff]
          %v1295 = vld [vmem:[#allocation2 + $0xb8] sm:$0xff]
          %v1296 = vld [vmem:[#allocation2 + $0xc0] sm:$0xff]
          %v1297 = vld [vmem:[#allocation2 + $0xc8] sm:$0xff]
          %v1298 = vld [vmem:[#allocation2 + $0xd0] sm:$0xff]
          %v1299 = vld [vmem:[#allocation2 + $0xd8] sm:$0xff]
          %v1300 = vld [vmem:[#allocation2 + $0xe0] sm:$0xff]
          %v1301 = vld [vmem:[#allocation2 + $0xe8] sm:$0xff]
          %v1302 = vld [vmem:[#allocation2 + $0xf0] sm:$0xff]
          %v1303 = vld [vmem:[#allocation2 + $0xf8] sm:$0xff]
          %v1304 = vld [vmem:[#allocation2 + $0x100] sm:$0xff]
          %v1305 = vld [vmem:[#allocation2 + $0x108] sm:$0xff]
          %v1306 = vld [vmem:[#allocation2 + $0x110] sm:$0xff]
          %v1307 = vld [vmem:[#allocation2 + $0x118] sm:$0xff]
          %v1308 = vld [vmem:[#allocation2 + $0x120] sm:$0xff]
          %v1309 = vld [vmem:[#allocation2 + $0x128] sm:$0xff]
          %v1310 = vld [vmem:[#allocation2 + $0x130] sm:$0xff]
          %v1311 = vld [vmem:[#allocation2 + $0x138] sm:$0xff]
          %v1312 = vld [vmem:[#allocation2 + $0x140] sm:$0xff]
          %v1313 = vld [vmem:[#allocation2 + $0x148] sm:$0xff]
          %v1314 = vld [vmem:[#allocation2 + $0x150] sm:$0xff]
          %v1315 = vld [vmem:[#allocation2 + $0x158] sm:$0xff]
          %v1316 = vld [vmem:[#allocation2 + $0x160] sm:$0xff]
          %v1317 = vld [vmem:[#allocation2 + $0x168] sm:$0xff]
          %v1318 = vld [vmem:[#allocation2 + $0x170] sm:$0xff]
          %v1319 = vld [vmem:[#allocation2 + $0x178] sm:$0xff]
          %v1320 = vld [vmem:[#allocation2 + $0x180] sm:$0xff]
          %v1321 = vld [vmem:[#allocation2 + $0x188] sm:$0xff]
          %v1322 = vld [vmem:[#allocation2 + $0x190] sm:$0xff]
          %v1323 = vld [vmem:[#allocation2 + $0x198] sm:$0xff]
          %v1324 = vld [vmem:[#allocation2 + $0x1a0] sm:$0xff]
          %v1325 = vld [vmem:[#allocation2 + $0x1a8] sm:$0xff]
          %v1326 = vld [vmem:[#allocation2 + $0x1b0] sm:$0xff]
          %v1327 = vld [vmem:[#allocation2 + $0x1b8] sm:$0xff]
          %v1328 = vld [vmem:[#allocation2 + $0x1c0] sm:$0xff]
          %v1329 = vld [vmem:[#allocation2 + $0x1c8] sm:$0xff]
          %v1330 = vld [vmem:[#allocation2 + $0x1d0] sm:$0xff]
          %v1331 = vld [vmem:[#allocation2 + $0x1d8] sm:$0xff]
          %v1332 = vld [vmem:[#allocation2 + $0x1e0] sm:$0xff]
          %v1333 = vld [vmem:[#allocation2 + $0x1e8] sm:$0xff]
          %v1334 = vld [vmem:[#allocation2 + $0x1f0] sm:$0xff]
          %v1335 = vld [vmem:[#allocation2 + $0x1f8] sm:$0xff]
          %1336 = vst [vmem:[%s232] sm:$0xff] %v1272
          %1337 = vst [vmem:[%s232 + $0x8] sm:$0xff] %v1273
          %1338 = vst [vmem:[%s232 + $0x10] sm:$0xff] %v1274
          %1339 = vst [vmem:[%s232 + $0x18] sm:$0xff] %v1275
          %1340 = vst [vmem:[%s232 + $0x20] sm:$0xff] %v1276
          %1341 = vst [vmem:[%s232 + $0x28] sm:$0xff] %v1277
          %1342 = vst [vmem:[%s232 + $0x30] sm:$0xff] %v1278
          %1343 = vst [vmem:[%s232 + $0x38] sm:$0xff] %v1279
          %1344 = vst [vmem:[%s232 + $0x40] sm:$0xff] %v1280
          %1345 = vst [vmem:[%s232 + $0x48] sm:$0xff] %v1281
          %1346 = vst [vmem:[%s232 + $0x50] sm:$0xff] %v1282
          %1347 = vst [vmem:[%s232 + $0x58] sm:$0xff] %v1283
          %1348 = vst [vmem:[%s232 + $0x60] sm:$0xff] %v1284
          %1349 = vst [vmem:[%s232 + $0x68] sm:$0xff] %v1285
          %1350 = vst [vmem:[%s232 + $0x70] sm:$0xff] %v1286
          %1351 = vst [vmem:[%s232 + $0x78] sm:$0xff] %v1287
          %1352 = vst [vmem:[%s232 + $0x80] sm:$0xff] %v1288
          %1353 = vst [vmem:[%s232 + $0x88] sm:$0xff] %v1289
          %1354 = vst [vmem:[%s232 + $0x90] sm:$0xff] %v1290
          %1355 = vst [vmem:[%s232 + $0x98] sm:$0xff] %v1291
          %1356 = vst [vmem:[%s232 + $0xa0] sm:$0xff] %v1292
          %1357 = vst [vmem:[%s232 + $0xa8] sm:$0xff] %v1293
          %1358 = vst [vmem:[%s232 + $0xb0] sm:$0xff] %v1294
          %1359 = vst [vmem:[%s232 + $0xb8] sm:$0xff] %v1295
          %1360 = vst [vmem:[%s232 + $0xc0] sm:$0xff] %v1296
          %1361 = vst [vmem:[%s232 + $0xc8] sm:$0xff] %v1297
          %1362 = vst [vmem:[%s232 + $0xd0] sm:$0xff] %v1298
          %1363 = vst [vmem:[%s232 + $0xd8] sm:$0xff] %v1299
          %1364 = vst [vmem:[%s232 + $0xe0] sm:$0xff] %v1300
          %1365 = vst [vmem:[%s232 + $0xe8] sm:$0xff] %v1301
          %1366 = vst [vmem:[%s232 + $0xf0] sm:$0xff] %v1302
          %1367 = vst [vmem:[%s232 + $0xf8] sm:$0xff] %v1303
          %1368 = vst [vmem:[%s232 + $0x100] sm:$0xff] %v1304
          %1369 = vst [vmem:[%s232 + $0x108] sm:$0xff] %v1305
          %1370 = vst [vmem:[%s232 + $0x110] sm:$0xff] %v1306
          %1371 = vst [vmem:[%s232 + $0x118] sm:$0xff] %v1307
          %1372 = vst [vmem:[%s232 + $0x120] sm:$0xff] %v1308
          %1373 = vst [vmem:[%s232 + $0x128] sm:$0xff] %v1309
          %1374 = vst [vmem:[%s232 + $0x130] sm:$0xff] %v1310
          %1375 = vst [vmem:[%s232 + $0x138] sm:$0xff] %v1311
          %1376 = vst [vmem:[%s232 + $0x140] sm:$0xff] %v1312
          %1377 = vst [vmem:[%s232 + $0x148] sm:$0xff] %v1313
          %1378 = vst [vmem:[%s232 + $0x150] sm:$0xff] %v1314
          %1379 = vst [vmem:[%s232 + $0x158] sm:$0xff] %v1315
          %1380 = vst [vmem:[%s232 + $0x160] sm:$0xff] %v1316
          %1381 = vst [vmem:[%s232 + $0x168] sm:$0xff] %v1317
          %1382 = vst [vmem:[%s232 + $0x170] sm:$0xff] %v1318
          %1383 = vst [vmem:[%s232 + $0x178] sm:$0xff] %v1319
          %1384 = vst [vmem:[%s232 + $0x180] sm:$0xff] %v1320
          %1385 = vst [vmem:[%s232 + $0x188] sm:$0xff] %v1321
          %1386 = vst [vmem:[%s232 + $0x190] sm:$0xff] %v1322
          %1387 = vst [vmem:[%s232 + $0x198] sm:$0xff] %v1323
          %1388 = vst [vmem:[%s232 + $0x1a0] sm:$0xff] %v1324
          %1389 = vst [vmem:[%s232 + $0x1a8] sm:$0xff] %v1325
          %1390 = vst [vmem:[%s232 + $0x1b0] sm:$0xff] %v1326
          %1391 = vst [vmem:[%s232 + $0x1b8] sm:$0xff] %v1327
          %1392 = vst [vmem:[%s232 + $0x1c0] sm:$0xff] %v1328
          %1393 = vst [vmem:[%s232 + $0x1c8] sm:$0xff] %v1329
          %1394 = vst [vmem:[%s232 + $0x1d0] sm:$0xff] %v1330
          %1395 = vst [vmem:[%s232 + $0x1d8] sm:$0xff] %v1331
          %1396 = vst [vmem:[%s232 + $0x1e0] sm:$0xff] %v1332
          %1397 = vst [vmem:[%s232 + $0x1e8] sm:$0xff] %v1333
          %1398 = vst [vmem:[%s232 + $0x1f0] sm:$0xff] %v1334
          %1399 = vst [vmem:[%s232 + $0x1f8] sm:$0xff] %v1335
        $region44: #{tpu_custom_call.1} parent=27 // pred_fallthru
          _
        %s1400 = sand.u32 %s107, 1
        %s1401 = scalar_lea.sflag [#allocation5], %s1400
        %s1402 = sand.u32 %s107, 1
        %s1403 = smul.addr %s1402, 512
        %s1404 = scalar_lea.vmem [#allocation8], %s1403
        // Predicated region
        $region45: #{tpu_custom_call.1} parent=27 // pred_check
          %p1405 = pneg %p117
        $region46: #{tpu_custom_call.1} parent=27 // pred_check_branch
          %1407 = sbr.rel (%p1405) target = $region48
        $region47: #{tpu_custom_call.1} parent=27 // pred_region
          %s1408 = smul.u32 32, %s27
          %s1409 = smul.u32 2, %s28
          %s1411 = ssub.s32 8192, 8192
          %1412 = vsyncadd %s1401, %s1411
          %s1413 = smul.addr %s1408, 8
          %s1414 = sadd.s32 %s1409, %s1413
          %s1415 = smul.addr %s1414, 128
          %s1416 = scalar_lea.hbm %s2, %s1415
          %s1417 = sshll.u32 %s1404, 4
          %s1418 = int_to_ptr.vmem [resolvable:$true] %s1417
          %1423 = dma.vmem_to_hbm [thread:$0]  %s1418, 8192, %s1416, %s1401, 256, 1024, 16
        $region48: #{tpu_custom_call.1} parent=27 // pred_fallthru
          _
      $region28: #{tpu_custom_call.1} parent=5 // pred_fallthru
        _
      %p1424 = scmp.le.s32.totalorder 2, %s17
      // Predicated region
      $region49: #{tpu_custom_call.1} parent=5 // pred_check
        %p1425 = pneg %p1424
      $region50: #{tpu_custom_call.1} parent=5 // pred_check_branch
        %1427 = sbr.rel (%p1425) target = $region52
      $region51: #{tpu_custom_call.1} parent=5 // pred_region
        %s1428 = ssub.s32 %s17, 2
        // Predicated region
        $region53: #{tpu_custom_call.1} parent=51 // pred_check
          %p1429 = pneg %p123
        $region54: #{tpu_custom_call.1} parent=51 // pred_check_branch
          %1431 = sbr.rel (%p1429) target = $region56
        $region55: #{tpu_custom_call.1} parent=51 // pred_region
          %s1432 = sand.u32 %s108, 1
          %s1433 = scalar_lea.sflag [#allocation5], %s1432
          %s1434 = sand.u32 %s108, 1
          %s1435 = smul.addr %s1434, 512
          %s1436 = scalar_lea.vmem [#allocation8], %s1435
          %1437 = dma.done %s1433, 8192
        $region56: #{tpu_custom_call.1} parent=51 // pred_fallthru
          _
      $region52: #{tpu_custom_call.1} parent=5 // pred_fallthru
        _
    $region6: #{tpu_custom_call.1} parent=1 // loop_footer
      %s21 = sadd.s32 1, %s17
    $region7: #{tpu_custom_call.1} parent=1 // loop_footer_branch
      %16 = sbr.rel target = $region3
    $region8: #{tpu_custom_call.1} parent=1 // loop_exit
      _
    %1438 = vsyncpa [#allocation4], 1
    %s1439 = scalar_lea.sflag [#allocation4], 1
    %1440 = vsyncpa %s1439, 1
    %1441 = vsyncpa [#allocation7], 1
    %s1442 = scalar_lea.sflag [#allocation7], 1
    %1443 = vsyncpa %s1442, 1
    %1444 = vsyncpa [#allocation5], 1
    %s1445 = scalar_lea.sflag [#allocation5], 1
    %1446 = vsyncpa %s1445, 1

</llo_original>
